<compile_context>
chip_gen: v7x
topology: tpu7x:2x2x1
jax: 0.10.0
libtpu: 0.0.40
codegen_flags: <defaults>
</compile_context>

<pallas_src>
import math

import jax
import jax.numpy as jnp
import numpy as np
from jax.experimental import pallas as pl
from jax.experimental.pallas import tpu as pltpu


def transformer_block_kernel(x_ref, wqkv_ref, wph_ref, bp_ref,
                             w1_ref, b1_ref, w2_ref, b2_ref,
                             g1_ref, be1_ref, g2_ref, be2_ref,
                             o_ref, qh_scr, kh_scr, vh_scr):
    x = x_ref[0]                                    # (T, E)
    n_head, hs, _ = wph_ref.shape
    E = n_head * hs
    scale = 1.0 / math.sqrt(hs)                     # SDPA default scale

    # --- fused QKV projection: one wide MXU matmul -------------------------
    qkv = jnp.dot(x, wqkv_ref[...], preferred_element_type=jnp.float32)   # (T, 3E)
    q = qkv[:, :E] * scale            # fold softmax scale into q (cheap: T*E mults)
    k = qkv[:, E:2 * E]
    v = qkv[:, 2 * E:]

    # --- head-major (H, T, hs) views via tiny VMEM scratch -----------------
    # Static lane slices + per-head stores (data movement only); avoids
    # lane-splitting reshapes and any minor-axis concatenation.
    for h in range(n_head):
        lo = h * hs
        qh_scr[h] = q[:, lo:lo + hs]
        kh_scr[h] = k[:, lo:lo + hs]
        vh_scr[h] = v[:, lo:lo + hs]
    qh = qh_scr[...]
    kh = kh_scr[...]
    vh = vh_scr[...]

    # --- attention, batched over heads (no mask, matching the PyTorch fwd) --
    s = jnp.einsum('htd,hsd->hts', qh, kh,
                   preferred_element_type=jnp.float32)        # (H, T, T)
    s = s - jnp.max(s, axis=-1, keepdims=True)
    p = jnp.exp(s)
    p = p * pl.reciprocal(jnp.sum(p, axis=-1, keepdims=True), approx=True)
    ctx = jnp.einsum('hts,hsd->htd', p, vh,
                     preferred_element_type=jnp.float32)      # (H, T, hs)

    # --- output projection with the head concat folded into the contraction -
    proj = jnp.einsum('htd,hde->hte', ctx, wph_ref[...],
                      preferred_element_type=jnp.float32)     # (H, T, E)
    sa = jnp.sum(proj, axis=0) + bp_ref[...]                  # (T, E)

    # --- residual + LayerNorm 1 --------------------------------------------
    r1 = x + sa
    mu1 = jnp.mean(r1, axis=-1, keepdims=True)
    var1 = jnp.mean((r1 - mu1) ** 2, axis=-1, keepdims=True)
    y1 = (r1 - mu1) * jax.lax.rsqrt(var1 + 1e-5) * g1_ref[...] + be1_ref[...]

    # --- feed-forward (Linear -> ReLU -> Linear) -----------------------------
    h1 = jnp.maximum(
        jnp.dot(y1, w1_ref[...], preferred_element_type=jnp.float32) + b1_ref[...],
        0.0)
    h2 = jnp.dot(h1, w2_ref[...], preferred_element_type=jnp.float32) + b2_ref[...]

    # --- residual + LayerNorm 2 ----------------------------------------------
    r2 = y1 + h2
    mu2 = jnp.mean(r2, axis=-1, keepdims=True)
    var2 = jnp.mean((r2 - mu2) ** 2, axis=-1, keepdims=True)
    o_ref[0] = (r2 - mu2) * jax.lax.rsqrt(var2 + 1e-5) * g2_ref[...] + be2_ref[...]


def transformer_block(x, params, n_head):
    (wqkv, wp, bp, w1, b1, w2, b2, g1, be1, g2, be2) = params
    B, T, E = x.shape
    hs = E // n_head
    hid = w1.shape[1]
    wph = wp.reshape(n_head, hs, E)   # head-grouped rows of the output projection

    def const2(shape):
        return pl.BlockSpec(shape, lambda b: (0, 0))

    def const3(shape):
        return pl.BlockSpec(shape, lambda b: (0, 0, 0))

    return pl.pallas_call(
        transformer_block_kernel,
        out_shape=jax.ShapeDtypeStruct((B, T, E), jnp.float32),
        grid=(B,),
        in_specs=[
            pl.BlockSpec((1, T, E), lambda b: (b, 0, 0)),   # x: one batch slab
            const2((E, 3 * E)),                             # fused Wqkv
            const3((n_head, hs, E)),                        # Wproj as (H, hs, E)
            const2((1, E)),                                 # proj bias
            const2((E, hid)), const2((1, hid)),             # ffwd layer 1
            const2((hid, E)), const2((1, E)),               # ffwd layer 2
            const2((1, E)), const2((1, E)),                 # ln1 gamma/beta
            const2((1, E)), const2((1, E)),                 # ln2 gamma/beta
        ],
        out_specs=pl.BlockSpec((1, T, E), lambda b: (b, 0, 0)),
        scratch_shapes=[pltpu.VMEM((n_head, T, hs), jnp.float32)] * 3,
        compiler_params=pltpu.CompilerParams(
            dimension_semantics=("parallel",),
            vmem_limit_bytes=64 * 1024 * 1024),
    )(x, wqkv, wph, bp, w1, b1, w2, b2, g1, be1, g2, be2)


def init_params(key, n_embd, n_head, hidden):
    del n_head  # head split is implicit in the column grouping of wqkv / rows of wp
    ks = jax.random.split(key, 11)
    sc = 0.1
    wqkv = sc * jax.random.normal(ks[0], (n_embd, 3 * n_embd), jnp.float32)
    wp = sc * jax.random.normal(ks[1], (n_embd, n_embd), jnp.float32)
    bp = sc * jax.random.normal(ks[2], (1, n_embd), jnp.float32)
    w1 = sc * jax.random.normal(ks[3], (n_embd, hidden), jnp.float32)
    b1 = sc * jax.random.normal(ks[4], (1, hidden), jnp.float32)
    w2 = sc * jax.random.normal(ks[5], (hidden, n_embd), jnp.float32)
    b2 = sc * jax.random.normal(ks[6], (1, n_embd), jnp.float32)
    g1 = 1.0 + sc * jax.random.normal(ks[7], (1, n_embd), jnp.float32)
    be1 = sc * jax.random.normal(ks[8], (1, n_embd), jnp.float32)
    g2 = 1.0 + sc * jax.random.normal(ks[9], (1, n_embd), jnp.float32)
    be2 = sc * jax.random.normal(ks[10], (1, n_embd), jnp.float32)
    return (wqkv, wp, bp, w1, b1, w2, b2, g1, be1, g2, be2)


def reference_block(x, params, n_head):
    """Pure-JAX reference mirroring the PyTorch forward (per-head SDPA, no mask)."""
    (wqkv, wp, bp, w1, b1, w2, b2, g1, be1, g2, be2) = params
    E = x.shape[-1]
    hs = E // n_head
    wq, wk, wv = wqkv[:, :E], wqkv[:, E:2 * E], wqkv[:, 2 * E:]
    scale = 1.0 / math.sqrt(hs)

    def ln(v, g, b):
        mu = jnp.mean(v, axis=-1, keepdims=True)
        var = jnp.mean((v - mu) ** 2, axis=-1, keepdims=True)
        return (v - mu) * jax.lax.rsqrt(var + 1e-5) * g + b

    heads = []
    for h in range(n_head):
        sl = slice(h * hs, (h + 1) * hs)
        q = x @ wq[:, sl]
        k = x @ wk[:, sl]
        v = x @ wv[:, sl]
        s = jnp.einsum('btd,bsd->bts', q, k) * scale
        p = jax.nn.softmax(s, axis=-1)
        heads.append(jnp.einsum('bts,bsd->btd', p, v))
    sa = jnp.concatenate(heads, axis=-1) @ wp + bp[0]
    y1 = ln(x + sa, g1[0], be1[0])
    h1 = jnp.maximum(y1 @ w1 + b1[0], 0.0)
    h2 = h1 @ w2 + b2[0]
    return ln(y1 + h2, g2[0], be2[0])


if __name__ == "__main__":
    B, T, n_embd, n_head, hidden = 2, 16, 128, 4, 256   # lane-dense small shapes
    key = jax.random.PRNGKey(0)
    kx, kp = jax.random.split(key)
    x = jax.random.normal(kx, (B, T, n_embd), jnp.float32)
    params = init_params(kp, n_embd, n_head, hidden)

    out = transformer_block(x, params, n_head)
    out = jax.block_until_ready(out)

    ref = reference_block(x, params, n_head)
    # Tolerance loosened slightly to cover pl.reciprocal(approx=True) in softmax
    # and MXU accumulation-order differences vs. the fused matmuls.
    np.testing.assert_allclose(np.asarray(out), np.asarray(ref),
                               rtol=5e-3, atol=5e-3)
    print("KERNEL_OK")
</pallas_src>

<mosaic_0001>
module attributes {stable_mosaic.version = 11 : i64} {
  func.func @transformer_block_kernel(%arg0: i32, %arg1: memref<1x16x128xf32, #tpu.memory_space<vmem>>, %arg2: memref<128x384xf32, #tpu.memory_space<vmem>>, %arg3: memref<4x32x128xf32, #tpu.memory_space<vmem>>, %arg4: memref<1x128xf32, #tpu.memory_space<vmem>>, %arg5: memref<128x256xf32, #tpu.memory_space<vmem>>, %arg6: memref<1x256xf32, #tpu.memory_space<vmem>>, %arg7: memref<256x128xf32, #tpu.memory_space<vmem>>, %arg8: memref<1x128xf32, #tpu.memory_space<vmem>>, %arg9: memref<1x128xf32, #tpu.memory_space<vmem>>, %arg10: memref<1x128xf32, #tpu.memory_space<vmem>>, %arg11: memref<1x128xf32, #tpu.memory_space<vmem>>, %arg12: memref<1x128xf32, #tpu.memory_space<vmem>>, %arg13: memref<1x16x128xf32, #tpu.memory_space<vmem>>, %arg14: memref<4x16x32xf32, #tpu.memory_space<vmem>>, %arg15: memref<4x16x32xf32, #tpu.memory_space<vmem>>, %arg16: memref<4x16x32xf32, #tpu.memory_space<vmem>>) attributes {dimension_semantics = [#tpu.dimension_semantics<parallel>], iteration_bounds = array<i64: 2>, scalar_prefetch = 0 : i64, scratch_operands = 3 : i64, tpu.core_type = #tpu.core_type<tc>, window_params = [{transform_indices = @transform_0, window_bounds = array<i64: 1, 16, 128>}, {pipeline_mode = #tpu.pipeline_mode<synchronous>, transform_indices = @transform_1, window_bounds = array<i64: 128, 384>}, {pipeline_mode = #tpu.pipeline_mode<synchronous>, transform_indices = @transform_2, window_bounds = array<i64: 4, 32, 128>}, {pipeline_mode = #tpu.pipeline_mode<synchronous>, transform_indices = @transform_3, window_bounds = array<i64: 1, 128>}, {pipeline_mode = #tpu.pipeline_mode<synchronous>, transform_indices = @transform_4, window_bounds = array<i64: 128, 256>}, {pipeline_mode = #tpu.pipeline_mode<synchronous>, transform_indices = @transform_5, window_bounds = array<i64: 1, 256>}, {pipeline_mode = #tpu.pipeline_mode<synchronous>, transform_indices = @transform_6, window_bounds = array<i64: 256, 128>}, {pipeline_mode = #tpu.pipeline_mode<synchronous>, transform_indices = @transform_7, window_bounds = array<i64: 1, 128>}, {pipeline_mode = #tpu.pipeline_mode<synchronous>, transform_indices = @transform_8, window_bounds = array<i64: 1, 128>}, {pipeline_mode = #tpu.pipeline_mode<synchronous>, transform_indices = @transform_9, window_bounds = array<i64: 1, 128>}, {pipeline_mode = #tpu.pipeline_mode<synchronous>, transform_indices = @transform_10, window_bounds = array<i64: 1, 128>}, {pipeline_mode = #tpu.pipeline_mode<synchronous>, transform_indices = @transform_11, window_bounds = array<i64: 1, 128>}, {transform_indices = @transform_12, window_bounds = array<i64: 1, 16, 128>}]} {
    %c0 = arith.constant 0 : index
    %c0_0 = arith.constant 0 : index
    %c0_1 = arith.constant 0 : index
    %0 = vector.load %arg1[%c0, %c0_0, %c0_1] : memref<1x16x128xf32, #tpu.memory_space<vmem>>, vector<1x16x128xf32>
    %1 = vector.shape_cast %0 : vector<1x16x128xf32> to vector<16x128xf32>
    %c0_2 = arith.constant 0 : index
    %c0_3 = arith.constant 0 : index
    %2 = vector.load %arg2[%c0_2, %c0_3] : memref<128x384xf32, #tpu.memory_space<vmem>>, vector<128x384xf32>
    %cst = arith.constant dense<0.000000e+00> : vector<16x384xf32>
    %3 = tpu.matmul %1, %2, %cst {dimension_numbers = #tpu.dot_dimension_numbers<[1], [0], [0], [1], [0, 0, 1, 1], [], []>} : vector<16x128xf32>, vector<128x384xf32>, vector<16x384xf32> -> vector<16x384xf32>
    %4 = vector.extract_strided_slice %3 {offsets = [0, 0], sizes = [16, 128], strides = [1, 1]} : vector<16x384xf32> to vector<16x128xf32>
    %cst_4 = arith.constant 0.176776692 : f32
    %5 = vector.broadcast %cst_4 : f32 to vector<16x128xf32>
    %6 = arith.mulf %4, %5 : vector<16x128xf32>
    %7 = vector.extract_strided_slice %3 {offsets = [0, 128], sizes = [16, 128], strides = [1, 1]} : vector<16x384xf32> to vector<16x128xf32>
    %8 = vector.extract_strided_slice %3 {offsets = [0, 256], sizes = [16, 128], strides = [1, 1]} : vector<16x384xf32> to vector<16x128xf32>
    %9 = vector.extract_strided_slice %6 {offsets = [0, 0], sizes = [16, 32], strides = [1, 1]} : vector<16x128xf32> to vector<16x32xf32>
    %c0_5 = arith.constant 0 : index
    %c0_6 = arith.constant 0 : index
    %c0_7 = arith.constant 0 : index
    %10 = vector.load %arg14[%c0_5, %c0_6, %c0_7] : memref<4x16x32xf32, #tpu.memory_space<vmem>>, vector<1x16x32xf32>
    %11 = vector.shape_cast %10 : vector<1x16x32xf32> to vector<16x32xf32>
    %12 = vector.shape_cast %9 : vector<16x32xf32> to vector<1x16x32xf32>
    tpu.vector_store %arg14[%c0_5, %c0_6, %c0_7], %12 {strides = array<i32>} : memref<4x16x32xf32, #tpu.memory_space<vmem>>, vector<1x16x32xf32>,
    %13 = vector.extract_strided_slice %7 {offsets = [0, 0], sizes = [16, 32], strides = [1, 1]} : vector<16x128xf32> to vector<16x32xf32>
    %c0_8 = arith.constant 0 : index
    %c0_9 = arith.constant 0 : index
    %c0_10 = arith.constant 0 : index
    %14 = vector.load %arg15[%c0_8, %c0_9, %c0_10] : memref<4x16x32xf32, #tpu.memory_space<vmem>>, vector<1x16x32xf32>
    %15 = vector.shape_cast %14 : vector<1x16x32xf32> to vector<16x32xf32>
    %16 = vector.shape_cast %13 : vector<16x32xf32> to vector<1x16x32xf32>
    tpu.vector_store %arg15[%c0_8, %c0_9, %c0_10], %16 {strides = array<i32>} : memref<4x16x32xf32, #tpu.memory_space<vmem>>, vector<1x16x32xf32>,
    %17 = vector.extract_strided_slice %8 {offsets = [0, 0], sizes = [16, 32], strides = [1, 1]} : vector<16x128xf32> to vector<16x32xf32>
    %c0_11 = arith.constant 0 : index
    %c0_12 = arith.constant 0 : index
    %c0_13 = arith.constant 0 : index
    %18 = vector.load %arg16[%c0_11, %c0_12, %c0_13] : memref<4x16x32xf32, #tpu.memory_space<vmem>>, vector<1x16x32xf32>
    %19 = vector.shape_cast %18 : vector<1x16x32xf32> to vector<16x32xf32>
    %20 = vector.shape_cast %17 : vector<16x32xf32> to vector<1x16x32xf32>
    tpu.vector_store %arg16[%c0_11, %c0_12, %c0_13], %20 {strides = array<i32>} : memref<4x16x32xf32, #tpu.memory_space<vmem>>, vector<1x16x32xf32>,
    %21 = vector.extract_strided_slice %6 {offsets = [0, 32], sizes = [16, 32], strides = [1, 1]} : vector<16x128xf32> to vector<16x32xf32>
    %c1 = arith.constant 1 : index
    %c0_14 = arith.constant 0 : index
    %c0_15 = arith.constant 0 : index
    %22 = vector.load %arg14[%c1, %c0_14, %c0_15] : memref<4x16x32xf32, #tpu.memory_space<vmem>>, vector<1x16x32xf32>
    %23 = vector.shape_cast %22 : vector<1x16x32xf32> to vector<16x32xf32>
    %24 = vector.shape_cast %21 : vector<16x32xf32> to vector<1x16x32xf32>
    tpu.vector_store %arg14[%c1, %c0_14, %c0_15], %24 {strides = array<i32>} : memref<4x16x32xf32, #tpu.memory_space<vmem>>, vector<1x16x32xf32>,
    %25 = vector.extract_strided_slice %7 {offsets = [0, 32], sizes = [16, 32], strides = [1, 1]} : vector<16x128xf32> to vector<16x32xf32>
    %c1_16 = arith.constant 1 : index
    %c0_17 = arith.constant 0 : index
    %c0_18 = arith.constant 0 : index
    %26 = vector.load %arg15[%c1_16, %c0_17, %c0_18] : memref<4x16x32xf32, #tpu.memory_space<vmem>>, vector<1x16x32xf32>
    %27 = vector.shape_cast %26 : vector<1x16x32xf32> to vector<16x32xf32>
    %28 = vector.shape_cast %25 : vector<16x32xf32> to vector<1x16x32xf32>
    tpu.vector_store %arg15[%c1_16, %c0_17, %c0_18], %28 {strides = array<i32>} : memref<4x16x32xf32, #tpu.memory_space<vmem>>, vector<1x16x32xf32>,
    %29 = vector.extract_strided_slice %8 {offsets = [0, 32], sizes = [16, 32], strides = [1, 1]} : vector<16x128xf32> to vector<16x32xf32>
    %c1_19 = arith.constant 1 : index
    %c0_20 = arith.constant 0 : index
    %c0_21 = arith.constant 0 : index
    %30 = vector.load %arg16[%c1_19, %c0_20, %c0_21] : memref<4x16x32xf32, #tpu.memory_space<vmem>>, vector<1x16x32xf32>
    %31 = vector.shape_cast %30 : vector<1x16x32xf32> to vector<16x32xf32>
    %32 = vector.shape_cast %29 : vector<16x32xf32> to vector<1x16x32xf32>
    tpu.vector_store %arg16[%c1_19, %c0_20, %c0_21], %32 {strides = array<i32>} : memref<4x16x32xf32, #tpu.memory_space<vmem>>, vector<1x16x32xf32>,
    %33 = vector.extract_strided_slice %6 {offsets = [0, 64], sizes = [16, 32], strides = [1, 1]} : vector<16x128xf32> to vector<16x32xf32>
    %c2 = arith.constant 2 : index
    %c0_22 = arith.constant 0 : index
    %c0_23 = arith.constant 0 : index
    %34 = vector.load %arg14[%c2, %c0_22, %c0_23] : memref<4x16x32xf32, #tpu.memory_space<vmem>>, vector<1x16x32xf32>
    %35 = vector.shape_cast %34 : vector<1x16x32xf32> to vector<16x32xf32>
    %36 = vector.shape_cast %33 : vector<16x32xf32> to vector<1x16x32xf32>
    tpu.vector_store %arg14[%c2, %c0_22, %c0_23], %36 {strides = array<i32>} : memref<4x16x32xf32, #tpu.memory_space<vmem>>, vector<1x16x32xf32>,
    %37 = vector.extract_strided_slice %7 {offsets = [0, 64], sizes = [16, 32], strides = [1, 1]} : vector<16x128xf32> to vector<16x32xf32>
    %c2_24 = arith.constant 2 : index
    %c0_25 = arith.constant 0 : index
    %c0_26 = arith.constant 0 : index
    %38 = vector.load %arg15[%c2_24, %c0_25, %c0_26] : memref<4x16x32xf32, #tpu.memory_space<vmem>>, vector<1x16x32xf32>
    %39 = vector.shape_cast %38 : vector<1x16x32xf32> to vector<16x32xf32>
    %40 = vector.shape_cast %37 : vector<16x32xf32> to vector<1x16x32xf32>
    tpu.vector_store %arg15[%c2_24, %c0_25, %c0_26], %40 {strides = array<i32>} : memref<4x16x32xf32, #tpu.memory_space<vmem>>, vector<1x16x32xf32>,
    %41 = vector.extract_strided_slice %8 {offsets = [0, 64], sizes = [16, 32], strides = [1, 1]} : vector<16x128xf32> to vector<16x32xf32>
    %c2_27 = arith.constant 2 : index
    %c0_28 = arith.constant 0 : index
    %c0_29 = arith.constant 0 : index
    %42 = vector.load %arg16[%c2_27, %c0_28, %c0_29] : memref<4x16x32xf32, #tpu.memory_space<vmem>>, vector<1x16x32xf32>
    %43 = vector.shape_cast %42 : vector<1x16x32xf32> to vector<16x32xf32>
    %44 = vector.shape_cast %41 : vector<16x32xf32> to vector<1x16x32xf32>
    tpu.vector_store %arg16[%c2_27, %c0_28, %c0_29], %44 {strides = array<i32>} : memref<4x16x32xf32, #tpu.memory_space<vmem>>, vector<1x16x32xf32>,
    %45 = vector.extract_strided_slice %6 {offsets = [0, 96], sizes = [16, 32], strides = [1, 1]} : vector<16x128xf32> to vector<16x32xf32>
    %c3 = arith.constant 3 : index
    %c0_30 = arith.constant 0 : index
    %c0_31 = arith.constant 0 : index
    %46 = vector.load %arg14[%c3, %c0_30, %c0_31] : memref<4x16x32xf32, #tpu.memory_space<vmem>>, vector<1x16x32xf32>
    %47 = vector.shape_cast %46 : vector<1x16x32xf32> to vector<16x32xf32>
    %48 = vector.shape_cast %45 : vector<16x32xf32> to vector<1x16x32xf32>
    tpu.vector_store %arg14[%c3, %c0_30, %c0_31], %48 {strides = array<i32>} : memref<4x16x32xf32, #tpu.memory_space<vmem>>, vector<1x16x32xf32>,
    %49 = vector.extract_strided_slice %7 {offsets = [0, 96], sizes = [16, 32], strides = [1, 1]} : vector<16x128xf32> to vector<16x32xf32>
    %c3_32 = arith.constant 3 : index
    %c0_33 = arith.constant 0 : index
    %c0_34 = arith.constant 0 : index
    %50 = vector.load %arg15[%c3_32, %c0_33, %c0_34] : memref<4x16x32xf32, #tpu.memory_space<vmem>>, vector<1x16x32xf32>
    %51 = vector.shape_cast %50 : vector<1x16x32xf32> to vector<16x32xf32>
    %52 = vector.shape_cast %49 : vector<16x32xf32> to vector<1x16x32xf32>
    tpu.vector_store %arg15[%c3_32, %c0_33, %c0_34], %52 {strides = array<i32>} : memref<4x16x32xf32, #tpu.memory_space<vmem>>, vector<1x16x32xf32>,
    %53 = vector.extract_strided_slice %8 {offsets = [0, 96], sizes = [16, 32], strides = [1, 1]} : vector<16x128xf32> to vector<16x32xf32>
    %c3_35 = arith.constant 3 : index
    %c0_36 = arith.constant 0 : index
    %c0_37 = arith.constant 0 : index
    %54 = vector.load %arg16[%c3_35, %c0_36, %c0_37] : memref<4x16x32xf32, #tpu.memory_space<vmem>>, vector<1x16x32xf32>
    %55 = vector.shape_cast %54 : vector<1x16x32xf32> to vector<16x32xf32>
    %56 = vector.shape_cast %53 : vector<16x32xf32> to vector<1x16x32xf32>
    tpu.vector_store %arg16[%c3_35, %c0_36, %c0_37], %56 {strides = array<i32>} : memref<4x16x32xf32, #tpu.memory_space<vmem>>, vector<1x16x32xf32>,
    %c0_38 = arith.constant 0 : index
    %c0_39 = arith.constant 0 : index
    %c0_40 = arith.constant 0 : index
    %57 = vector.load %arg14[%c0_38, %c0_39, %c0_40] : memref<4x16x32xf32, #tpu.memory_space<vmem>>, vector<4x16x32xf32>
    %c0_41 = arith.constant 0 : index
    %c0_42 = arith.constant 0 : index
    %c0_43 = arith.constant 0 : index
    %58 = vector.load %arg15[%c0_41, %c0_42, %c0_43] : memref<4x16x32xf32, #tpu.memory_space<vmem>>, vector<4x16x32xf32>
    %c0_44 = arith.constant 0 : index
    %c0_45 = arith.constant 0 : index
    %c0_46 = arith.constant 0 : index
    %59 = vector.load %arg16[%c0_44, %c0_45, %c0_46] : memref<4x16x32xf32, #tpu.memory_space<vmem>>, vector<4x16x32xf32>
    "tpu.trace_start"() <{level = 10 : i32, message = "htd,hsd->hts"}> : () -> ()
    %cst_47 = arith.constant dense<0.000000e+00> : vector<4x16x16xf32>
    %60 = tpu.matmul %57, %58, %cst_47 {dimension_numbers = #tpu.dot_dimension_numbers<[2], [2], [1], [1], [0, 0, 0, 1, 1, 1], [0], [0]>} : vector<4x16x32xf32>, vector<4x16x32xf32>, vector<4x16x16xf32> -> vector<4x16x16xf32>
    "tpu.trace_stop"() : () -> ()
    %cst_48 = arith.constant dense<0xFF800000> : vector<4x16xf32>
    %61 = vector.multi_reduction <maximumf>, %60, %cst_48 [2] : vector<4x16x16xf32> to vector<4x16xf32>
    %62 = vector.shape_cast %61 : vector<4x16xf32> to vector<4x16x1xf32>
    %63 = vector.broadcast %62 : vector<4x16x1xf32> to vector<4x16x16xf32>
    %64 = arith.subf %60, %63 : vector<4x16x16xf32>
    %65 = math.exp %64 : vector<4x16x16xf32>
    %cst_49 = arith.constant dense<0.000000e+00> : vector<4x16xf32>
    %66 = vector.multi_reduction <add>, %65, %cst_49 [2] : vector<4x16x16xf32> to vector<4x16xf32>
    %67 = vector.shape_cast %66 : vector<4x16xf32> to vector<4x16x1xf32>
    %68 = tpu.reciprocal %67 {approx = true} : vector<4x16x1xf32> -> vector<4x16x1xf32>
    %69 = vector.broadcast %68 : vector<4x16x1xf32> to vector<4x16x16xf32>
    %70 = arith.mulf %65, %69 : vector<4x16x16xf32>
    "tpu.trace_start"() <{level = 10 : i32, message = "hts,hsd->htd"}> : () -> ()
    %cst_50 = arith.constant dense<0.000000e+00> : vector<4x16x32xf32>
    %71 = tpu.matmul %70, %59, %cst_50 {dimension_numbers = #tpu.dot_dimension_numbers<[2], [1], [1], [2], [0, 0, 0, 1, 1, 2], [0], [0]>} : vector<4x16x16xf32>, vector<4x16x32xf32>, vector<4x16x32xf32> -> vector<4x16x32xf32>
    "tpu.trace_stop"() : () -> ()
    %c0_51 = arith.constant 0 : index
    %c0_52 = arith.constant 0 : index
    %c0_53 = arith.constant 0 : index
    %72 = vector.load %arg3[%c0_51, %c0_52, %c0_53] : memref<4x32x128xf32, #tpu.memory_space<vmem>>, vector<4x32x128xf32>
    "tpu.trace_start"() <{level = 10 : i32, message = "htd,hde->hte"}> : () -> ()
    %cst_54 = arith.constant dense<0.000000e+00> : vector<4x16x128xf32>
    %73 = tpu.matmul %71, %72, %cst_54 {dimension_numbers = #tpu.dot_dimension_numbers<[2], [1], [1], [2], [0, 0, 0, 1, 1, 2], [0], [0]>} : vector<4x16x32xf32>, vector<4x32x128xf32>, vector<4x16x128xf32> -> vector<4x16x128xf32>
    "tpu.trace_stop"() : () -> ()
    %cst_55 = arith.constant dense<0.000000e+00> : vector<16x128xf32>
    %74 = vector.multi_reduction <add>, %73, %cst_55 [0] : vector<4x16x128xf32> to vector<16x128xf32>
    %c0_56 = arith.constant 0 : index
    %c0_57 = arith.constant 0 : index
    %75 = vector.load %arg4[%c0_56, %c0_57] : memref<1x128xf32, #tpu.memory_space<vmem>>, vector<1x128xf32>
    %76 = vector.broadcast %75 : vector<1x128xf32> to vector<16x128xf32>
    %77 = arith.addf %74, %76 : vector<16x128xf32>
    %78 = arith.addf %1, %77 : vector<16x128xf32>
    %cst_58 = arith.constant dense<0.000000e+00> : vector<16xf32>
    %79 = vector.multi_reduction <add>, %78, %cst_58 [1] : vector<16x128xf32> to vector<16xf32>
    %80 = vector.shape_cast %79 : vector<16xf32> to vector<16x1xf32>
    %cst_59 = arith.constant 1.280000e+02 : f32
    %81 = vector.broadcast %cst_59 : f32 to vector<16x1xf32>
    %82 = arith.divf %80, %81 : vector<16x1xf32>
    %83 = vector.broadcast %82 : vector<16x1xf32> to vector<16x128xf32>
    %84 = arith.subf %78, %83 : vector<16x128xf32>
    %85 = arith.mulf %84, %84 : vector<16x128xf32>
    %cst_60 = arith.constant dense<0.000000e+00> : vector<16xf32>
    %86 = vector.multi_reduction <add>, %85, %cst_60 [1] : vector<16x128xf32> to vector<16xf32>
    %87 = vector.shape_cast %86 : vector<16xf32> to vector<16x1xf32>
    %cst_61 = arith.constant 1.280000e+02 : f32
    %88 = vector.broadcast %cst_61 : f32 to vector<16x1xf32>
    %89 = arith.divf %87, %88 : vector<16x1xf32>
    %90 = vector.broadcast %82 : vector<16x1xf32> to vector<16x128xf32>
    %91 = arith.subf %78, %90 : vector<16x128xf32>
    %cst_62 = arith.constant 9.99999974E-6 : f32
    %92 = vector.broadcast %cst_62 : f32 to vector<16x1xf32>
    %93 = arith.addf %89, %92 : vector<16x1xf32>
    %94 = math.rsqrt %93 : vector<16x1xf32>
    %95 = vector.broadcast %94 : vector<16x1xf32> to vector<16x128xf32>
    %96 = arith.mulf %91, %95 : vector<16x128xf32>
    %c0_63 = arith.constant 0 : index
    %c0_64 = arith.constant 0 : index
    %97 = vector.load %arg9[%c0_63, %c0_64] : memref<1x128xf32, #tpu.memory_space<vmem>>, vector<1x128xf32>
    %98 = vector.broadcast %97 : vector<1x128xf32> to vector<16x128xf32>
    %99 = arith.mulf %96, %98 : vector<16x128xf32>
    %c0_65 = arith.constant 0 : index
    %c0_66 = arith.constant 0 : index
    %100 = vector.load %arg10[%c0_65, %c0_66] : memref<1x128xf32, #tpu.memory_space<vmem>>, vector<1x128xf32>
    %101 = vector.broadcast %100 : vector<1x128xf32> to vector<16x128xf32>
    %102 = arith.addf %99, %101 : vector<16x128xf32>
    %c0_67 = arith.constant 0 : index
    %c0_68 = arith.constant 0 : index
    %103 = vector.load %arg5[%c0_67, %c0_68] : memref<128x256xf32, #tpu.memory_space<vmem>>, vector<128x256xf32>
    %cst_69 = arith.constant dense<0.000000e+00> : vector<16x256xf32>
    %104 = tpu.matmul %102, %103, %cst_69 {dimension_numbers = #tpu.dot_dimension_numbers<[1], [0], [0], [1], [0, 0, 1, 1], [], []>} : vector<16x128xf32>, vector<128x256xf32>, vector<16x256xf32> -> vector<16x256xf32>
    %c0_70 = arith.constant 0 : index
    %c0_71 = arith.constant 0 : index
    %105 = vector.load %arg6[%c0_70, %c0_71] : memref<1x256xf32, #tpu.memory_space<vmem>>, vector<1x256xf32>
    %106 = vector.broadcast %105 : vector<1x256xf32> to vector<16x256xf32>
    %107 = arith.addf %104, %106 : vector<16x256xf32>
    %cst_72 = arith.constant 0.000000e+00 : f32
    %108 = vector.broadcast %cst_72 : f32 to vector<16x256xf32>
    %109 = arith.maximumf %107, %108 : vector<16x256xf32>
    %c0_73 = arith.constant 0 : index
    %c0_74 = arith.constant 0 : index
    %110 = vector.load %arg7[%c0_73, %c0_74] : memref<256x128xf32, #tpu.memory_space<vmem>>, vector<256x128xf32>
    %cst_75 = arith.constant dense<0.000000e+00> : vector<16x128xf32>
    %111 = tpu.matmul %109, %110, %cst_75 {dimension_numbers = #tpu.dot_dimension_numbers<[1], [0], [0], [1], [0, 0, 1, 1], [], []>} : vector<16x256xf32>, vector<256x128xf32>, vector<16x128xf32> -> vector<16x128xf32>
    %c0_76 = arith.constant 0 : index
    %c0_77 = arith.constant 0 : index
    %112 = vector.load %arg8[%c0_76, %c0_77] : memref<1x128xf32, #tpu.memory_space<vmem>>, vector<1x128xf32>
    %113 = vector.broadcast %112 : vector<1x128xf32> to vector<16x128xf32>
    %114 = arith.addf %111, %113 : vector<16x128xf32>
    %115 = arith.addf %102, %114 : vector<16x128xf32>
    %cst_78 = arith.constant dense<0.000000e+00> : vector<16xf32>
    %116 = vector.multi_reduction <add>, %115, %cst_78 [1] : vector<16x128xf32> to vector<16xf32>
    %117 = vector.shape_cast %116 : vector<16xf32> to vector<16x1xf32>
    %cst_79 = arith.constant 1.280000e+02 : f32
    %118 = vector.broadcast %cst_79 : f32 to vector<16x1xf32>
    %119 = arith.divf %117, %118 : vector<16x1xf32>
    %120 = vector.broadcast %119 : vector<16x1xf32> to vector<16x128xf32>
    %121 = arith.subf %115, %120 : vector<16x128xf32>
    %122 = arith.mulf %121, %121 : vector<16x128xf32>
    %cst_80 = arith.constant dense<0.000000e+00> : vector<16xf32>
    %123 = vector.multi_reduction <add>, %122, %cst_80 [1] : vector<16x128xf32> to vector<16xf32>
    %124 = vector.shape_cast %123 : vector<16xf32> to vector<16x1xf32>
    %cst_81 = arith.constant 1.280000e+02 : f32
    %125 = vector.broadcast %cst_81 : f32 to vector<16x1xf32>
    %126 = arith.divf %124, %125 : vector<16x1xf32>
    %127 = vector.broadcast %119 : vector<16x1xf32> to vector<16x128xf32>
    %128 = arith.subf %115, %127 : vector<16x128xf32>
    %cst_82 = arith.constant 9.99999974E-6 : f32
    %129 = vector.broadcast %cst_82 : f32 to vector<16x1xf32>
    %130 = arith.addf %126, %129 : vector<16x1xf32>
    %131 = math.rsqrt %130 : vector<16x1xf32>
    %132 = vector.broadcast %131 : vector<16x1xf32> to vector<16x128xf32>
    %133 = arith.mulf %128, %132 : vector<16x128xf32>
    %c0_83 = arith.constant 0 : index
    %c0_84 = arith.constant 0 : index
    %134 = vector.load %arg11[%c0_83, %c0_84] : memref<1x128xf32, #tpu.memory_space<vmem>>, vector<1x128xf32>
    %135 = vector.broadcast %134 : vector<1x128xf32> to vector<16x128xf32>
    %136 = arith.mulf %133, %135 : vector<16x128xf32>
    %c0_85 = arith.constant 0 : index
    %c0_86 = arith.constant 0 : index
    %137 = vector.load %arg12[%c0_85, %c0_86] : memref<1x128xf32, #tpu.memory_space<vmem>>, vector<1x128xf32>
    %138 = vector.broadcast %137 : vector<1x128xf32> to vector<16x128xf32>
    %139 = arith.addf %136, %138 : vector<16x128xf32>
    %c0_87 = arith.constant 0 : index
    %c0_88 = arith.constant 0 : index
    %c0_89 = arith.constant 0 : index
    %140 = vector.load %arg13[%c0_87, %c0_88, %c0_89] : memref<1x16x128xf32, #tpu.memory_space<vmem>>, vector<1x16x128xf32>
    %141 = vector.shape_cast %140 : vector<1x16x128xf32> to vector<16x128xf32>
    %142 = vector.shape_cast %139 : vector<16x128xf32> to vector<1x16x128xf32>
    tpu.vector_store %arg13[%c0_87, %c0_88, %c0_89], %142 {strides = array<i32>} : memref<1x16x128xf32, #tpu.memory_space<vmem>>, vector<1x16x128xf32>,
    return
  }
  func.func @transform_0(%arg0: i32) -> (i32, i32, i32) {
    %c0_i32 = arith.constant 0 : i32
    %c0_i32_0 = arith.constant 0 : i32
    %c0_i32_1 = arith.constant 0 : i32
    return %arg0, %c0_i32, %c0_i32_0 : i32, i32, i32
  }
  func.func @transform_1(%arg0: i32) -> (i32, i32) {
    %c0_i32 = arith.constant 0 : i32
    %c0_i32_0 = arith.constant 0 : i32
    %c0_i32_1 = arith.constant 0 : i32
    return %c0_i32, %c0_i32_0 : i32, i32
  }
  func.func @transform_2(%arg0: i32) -> (i32, i32, i32) {
    %c0_i32 = arith.constant 0 : i32
    %c0_i32_0 = arith.constant 0 : i32
    %c0_i32_1 = arith.constant 0 : i32
    %c0_i32_2 = arith.constant 0 : i32
    return %c0_i32, %c0_i32_0, %c0_i32_1 : i32, i32, i32
  }
  func.func @transform_3(%arg0: i32) -> (i32, i32) {
    %c0_i32 = arith.constant 0 : i32
    %c0_i32_0 = arith.constant 0 : i32
    %c0_i32_1 = arith.constant 0 : i32
    return %c0_i32, %c0_i32_0 : i32, i32
  }
  func.func @transform_4(%arg0: i32) -> (i32, i32) {
    %c0_i32 = arith.constant 0 : i32
    %c0_i32_0 = arith.constant 0 : i32
    %c0_i32_1 = arith.constant 0 : i32
    return %c0_i32, %c0_i32_0 : i32, i32
  }
  func.func @transform_5(%arg0: i32) -> (i32, i32) {
    %c0_i32 = arith.constant 0 : i32
    %c0_i32_0 = arith.constant 0 : i32
    %c0_i32_1 = arith.constant 0 : i32
    return %c0_i32, %c0_i32_0 : i32, i32
  }
  func.func @transform_6(%arg0: i32) -> (i32, i32) {
    %c0_i32 = arith.constant 0 : i32
    %c0_i32_0 = arith.constant 0 : i32
    %c0_i32_1 = arith.constant 0 : i32
    return %c0_i32, %c0_i32_0 : i32, i32
  }
  func.func @transform_7(%arg0: i32) -> (i32, i32) {
    %c0_i32 = arith.constant 0 : i32
    %c0_i32_0 = arith.constant 0 : i32
    %c0_i32_1 = arith.constant 0 : i32
    return %c0_i32, %c0_i32_0 : i32, i32
  }
  func.func @transform_8(%arg0: i32) -> (i32, i32) {
    %c0_i32 = arith.constant 0 : i32
    %c0_i32_0 = arith.constant 0 : i32
    %c0_i32_1 = arith.constant 0 : i32
    return %c0_i32, %c0_i32_0 : i32, i32
  }
  func.func @transform_9(%arg0: i32) -> (i32, i32) {
    %c0_i32 = arith.constant 0 : i32
    %c0_i32_0 = arith.constant 0 : i32
    %c0_i32_1 = arith.constant 0 : i32
    return %c0_i32, %c0_i32_0 : i32, i32
  }
  func.func @transform_10(%arg0: i32) -> (i32, i32) {
    %c0_i32 = arith.constant 0 : i32
    %c0_i32_0 = arith.constant 0 : i32
    %c0_i32_1 = arith.constant 0 : i32
    return %c0_i32, %c0_i32_0 : i32, i32
  }
  func.func @transform_11(%arg0: i32) -> (i32, i32) {
    %c0_i32 = arith.constant 0 : i32
    %c0_i32_0 = arith.constant 0 : i32
    %c0_i32_1 = arith.constant 0 : i32
    return %c0_i32, %c0_i32_0 : i32, i32
  }
  func.func @transform_12(%arg0: i32) -> (i32, i32, i32) {
    %c0_i32 = arith.constant 0 : i32
    %c0_i32_0 = arith.constant 0 : i32
    %c0_i32_1 = arith.constant 0 : i32
    return %arg0, %c0_i32, %c0_i32_0 : i32, i32, i32
  }
}

</mosaic_0001>

<llo_original>
// kernel: tpu_custom_call.1
$region0: #{tpu_custom_call.1}
  #allocation0 [shape = 'u32[]', space=smem, size = 0x4, offset = 0x4, fixed_abs, tag = 'smem constant byte address 0x4 - core index']
  #allocation1 [shape = 'u32[144,128]{1,0:T(1,128)}', space=vmem, size = 0x12000, scoped, tag = 'internal scratch']
  #allocation2 [shape = 'f32[4,16,32]{2,1,0:T(8,128)}', space=vmem, size = 0x8000, scoped, tag = 'scratch operand']
  #allocation3 [shape = 'f32[4,16,32]{2,1,0:T(8,128)}', space=vmem, size = 0x8000, scoped, tag = 'scratch operand']
  #allocation4 [shape = 'f32[4,16,32]{2,1,0:T(8,128)}', space=vmem, size = 0x8000, scoped, tag = 'scratch operand']
  %s0 = inlined_call_operand.hbm [shape: f32[2,16,128], index: 0, kind: input, shape index: {}]
  %s1 = inlined_call_operand.hbm [shape: f32[128,384], index: 1, kind: input, shape index: {}]
  %s2 = inlined_call_operand.hbm [shape: f32[4,32,128], index: 2, kind: input, shape index: {}]
  %s3 = inlined_call_operand.hbm [shape: f32[1,128], index: 3, kind: input, shape index: {}]
  %s4 = inlined_call_operand.hbm [shape: f32[128,256], index: 4, kind: input, shape index: {}]
  %s5 = inlined_call_operand.hbm [shape: f32[1,256], index: 5, kind: input, shape index: {}]
  %s6 = inlined_call_operand.hbm [shape: f32[256,128], index: 6, kind: input, shape index: {}]
  %s7 = inlined_call_operand.hbm [shape: f32[1,128], index: 7, kind: input, shape index: {}]
  %s8 = inlined_call_operand.hbm [shape: f32[1,128], index: 8, kind: input, shape index: {}]
  %s9 = inlined_call_operand.hbm [shape: f32[1,128], index: 9, kind: input, shape index: {}]
  %s10 = inlined_call_operand.hbm [shape: f32[1,128], index: 10, kind: input, shape index: {}]
  %s11 = inlined_call_operand.hbm [shape: f32[1,128], index: 11, kind: input, shape index: {}]
  %s12 = inlined_call_operand.hbm [shape: f32[2,16,128], index: 12, kind: output, shape index: {}]
  %s13 = sld [smem:[#allocation0]]
  $region129: #{tpu_custom_call.1} parent=0
    _
  %s15 = ssub.s32 1, %s13
  %s16 = scalar_select 0, %s15, %s13
  $region1: #{tpu_custom_call.1} parent=0
    #allocation5 [shape = 'u8[16384]{0}', space=vmem, size = 0x4000, scoped, tag = 'input window, operand 0']
    #allocation6 [shape = 's32[2]{0}', space=sflag, size = 0x8, scoped, tag = 'scoped memory for tpu_custom_call.1']
    #allocation7 [shape = 's32[2]{0}', space=sflag, size = 0x8, scoped, tag = 'scoped memory for tpu_custom_call.1']
    #allocation8 [shape = 'u8[196608]{0}', space=vmem, size = 0x30000, scoped, tag = 'input window, operand 1, single buffered']
    #allocation9 [shape = 's32[1]{0}', space=sflag, size = 0x4, scoped, tag = 'scoped memory for tpu_custom_call.1']
    #allocation10 [shape = 'u8[65536]{0}', space=vmem, size = 0x10000, scoped, tag = 'input window, operand 2, single buffered']
    #allocation11 [shape = 'u8[512]{0}', space=vmem, size = 0x400, scoped, tag = 'input window, operand 3, single buffered']
    #allocation12 [shape = 's32[1]{0}', space=sflag, size = 0x4, scoped, tag = 'scoped memory for tpu_custom_call.1']
    #allocation13 [shape = 'u8[131072]{0}', space=vmem, size = 0x20000, scoped, tag = 'input window, operand 4, single buffered']
    #allocation14 [shape = 'u8[1024]{0}', space=vmem, size = 0x400, scoped, tag = 'input window, operand 5, single buffered']
    #allocation15 [shape = 's32[1]{0}', space=sflag, size = 0x4, scoped, tag = 'scoped memory for tpu_custom_call.1']
    #allocation16 [shape = 'u8[131072]{0}', space=vmem, size = 0x20000, scoped, tag = 'input window, operand 6, single buffered']
    #allocation17 [shape = 'u8[512]{0}', space=vmem, size = 0x400, scoped, tag = 'input window, operand 7, single buffered']
    #allocation18 [shape = 's32[1]{0}', space=sflag, size = 0x4, scoped, tag = 'scoped memory for tpu_custom_call.1']
    #allocation19 [shape = 'u8[512]{0}', space=vmem, size = 0x400, scoped, tag = 'input window, operand 8, single buffered']
    #allocation20 [shape = 'u8[512]{0}', space=vmem, size = 0x400, scoped, tag = 'input window, operand 9, single buffered']
    #allocation21 [shape = 's32[1]{0}', space=sflag, size = 0x4, scoped, tag = 'scoped memory for tpu_custom_call.1']
    #allocation22 [shape = 'u8[512]{0}', space=vmem, size = 0x400, scoped, tag = 'input window, operand 10, single buffered']
    #allocation23 [shape = 'u8[512]{0}', space=vmem, size = 0x400, scoped, tag = 'input window, operand 11, single buffered']
    #allocation24 [shape = 's32[1]{0}', space=sflag, size = 0x4, scoped, tag = 'scoped memory for tpu_custom_call.1']
    #allocation25 [shape = 'u8[16384]{0}', space=vmem, size = 0x4000, scoped, tag = 'output window, operand 0']
    %17 = vsyncpa [#allocation6], 0
    %s18 = scalar_lea.sflag [#allocation6], 1
    %19 = vsyncpa %s18, 0
    %20 = vsyncpa [#allocation9], 0
    %21 = vsyncpa [#allocation12], 0
    %22 = vsyncpa [#allocation15], 0
    %23 = vsyncpa [#allocation18], 0
    %24 = vsyncpa [#allocation21], 0
    %25 = vsyncpa [#allocation24], 0
    %26 = vsyncpa [#allocation7], 0
    %s27 = scalar_lea.sflag [#allocation7], 1
    %28 = vsyncpa %s27, 0
    loop: start=0, step=1, limit=4
    $region2: #{tpu_custom_call.1} parent=1 // loop_pre_header
      _
    $region3: #{tpu_custom_call.1} parent=1 // loop_header
      %s30 = sphi 0, %s34
      %p31 = scmp.ge.s32.totalorder %s30, 4
      %s40 = sphi 0, %s42
      %s43 = sphi 0, %s40
      %s44 = sphi 0, %s43
      %s60 = sphi 0, %s44
      %s64 = sphi 0, %s64
      %s66 = sphi 0, %s64
      %s67 = sphi 0, %s66
      %s81 = sphi 0, %s67
      %s85 = sphi 0, %s85
      %s87 = sphi 0, %s85
      %s88 = sphi 0, %s87
      %s102 = sphi 0, %s88
      %s106 = sphi 0, %s106
      %s108 = sphi 0, %s106
      %s109 = sphi 0, %s108
      %s123 = sphi 0, %s109
      %s127 = sphi 0, %s127
      %s129 = sphi 0, %s127
      %s130 = sphi 0, %s129
      %s144 = sphi 0, %s130
      %s148 = sphi 0, %s148
      %s150 = sphi 0, %s148
      %s151 = sphi 0, %s150
      %s165 = sphi 0, %s151
      %s169 = sphi 0, %s169
      %s171 = sphi 0, %s169
      %s172 = sphi 0, %s171
      %s186 = sphi 0, %s172
      %s190 = sphi 0, %s190
      %s192 = sphi 0, %s190
      %s193 = sphi 0, %s192
      %s207 = sphi 0, %s193
      %s211 = sphi 0, %s211
      %s213 = sphi 0, %s211
      %s214 = sphi 0, %s213
      %s228 = sphi 0, %s214
      %s232 = sphi 0, %s232
      %s234 = sphi 0, %s232
      %s235 = sphi 0, %s234
      %s249 = sphi 0, %s235
      %s253 = sphi 0, %s253
      %s255 = sphi 0, %s253
      %s256 = sphi 0, %s255
      %s270 = sphi 0, %s256
      %s274 = sphi 0, %s274
      %s276 = sphi 0, %s274
      %s277 = sphi 0, %s276
      %s291 = sphi 0, %s277
      %s297 = sphi 0, %s299
      %s300 = sphi 0, %s297
      %s301 = sphi 0, %s300
      %s317 = sphi 0, %s301
    $region4: #{tpu_custom_call.1} parent=1 // loop_header_branch
      %33 = sbr.rel (%p31) target = $region8
    $region5: #{tpu_custom_call.1} parent=1 // loop_body
      %s35 = ssub.s32 %s30, 1
      %s36 = ssub.s32 %s30, 2
      %s37 = sadd.s32 %s30, 1
      %s38 = ssub.s32 %s30, %s37
      %p39 = scmp.eq.s32.totalorder %s38, 0
      %s41 = sadd.s32 %s40, 1
      %s42 = scalar_select %p39, %s40, %s41
      %p45 = pneg %p39
      %p46 = scmp.eq.s32.totalorder %s30, 1
      %p47 = por %p45, %p46
      %p48 = scmp.ne.s32.totalorder %s40, %s43
      %p49 = scmp.eq.s32.totalorder %s30, 0
      %p50 = por %p48, %p49
      %p51 = scmp.ne.s32.totalorder %s40, %s43
      %p52 = scmp.eq.s32.totalorder %s35, 1
      %p53 = por %p51, %p52
      %p54 = scmp.ne.s32.totalorder %s43, %s44
      %p55 = scmp.eq.s32.totalorder %s35, 0
      %p56 = por %p54, %p55
      %p57 = scmp.ne.s32.totalorder %s43, %s44
      %p58 = scmp.eq.s32.totalorder %s36, 1
      %p59 = por %p57, %p58
      %p61 = scmp.ne.s32.totalorder %s44, %s60
      %p62 = scmp.eq.s32.totalorder %s36, 0
      %p63 = por %p61, %p62
      %s65 = sadd.s32 %s64, 1
      %p68 = scmp.eq.s32.totalorder %s30, 1
      %p69 = scmp.ne.s32.totalorder %s64, %s66
      %p70 = scmp.eq.s32.totalorder %s30, 0
      %p71 = por %p69, %p70
      %p72 = scmp.ne.s32.totalorder %s64, %s66
      %p73 = scmp.eq.s32.totalorder %s35, 1
      %p74 = por %p72, %p73
      %p75 = scmp.ne.s32.totalorder %s66, %s67
      %p76 = scmp.eq.s32.totalorder %s35, 0
      %p77 = por %p75, %p76
      %p78 = scmp.ne.s32.totalorder %s66, %s67
      %p79 = scmp.eq.s32.totalorder %s36, 1
      %p80 = por %p78, %p79
      %p82 = scmp.ne.s32.totalorder %s67, %s81
      %p83 = scmp.eq.s32.totalorder %s36, 0
      %p84 = por %p82, %p83
      %s86 = sadd.s32 %s85, 1
      %p89 = scmp.eq.s32.totalorder %s30, 1
      %p90 = scmp.ne.s32.totalorder %s85, %s87
      %p91 = scmp.eq.s32.totalorder %s30, 0
      %p92 = por %p90, %p91
      %p93 = scmp.ne.s32.totalorder %s85, %s87
      %p94 = scmp.eq.s32.totalorder %s35, 1
      %p95 = por %p93, %p94
      %p96 = scmp.ne.s32.totalorder %s87, %s88
      %p97 = scmp.eq.s32.totalorder %s35, 0
      %p98 = por %p96, %p97
      %p99 = scmp.ne.s32.totalorder %s87, %s88
      %p100 = scmp.eq.s32.totalorder %s36, 1
      %p101 = por %p99, %p100
      %p103 = scmp.ne.s32.totalorder %s88, %s102
      %p104 = scmp.eq.s32.totalorder %s36, 0
      %p105 = por %p103, %p104
      %s107 = sadd.s32 %s106, 1
      %p110 = scmp.eq.s32.totalorder %s30, 1
      %p111 = scmp.ne.s32.totalorder %s106, %s108
      %p112 = scmp.eq.s32.totalorder %s30, 0
      %p113 = por %p111, %p112
      %p114 = scmp.ne.s32.totalorder %s106, %s108
      %p115 = scmp.eq.s32.totalorder %s35, 1
      %p116 = por %p114, %p115
      %p117 = scmp.ne.s32.totalorder %s108, %s109
      %p118 = scmp.eq.s32.totalorder %s35, 0
      %p119 = por %p117, %p118
      %p120 = scmp.ne.s32.totalorder %s108, %s109
      %p121 = scmp.eq.s32.totalorder %s36, 1
      %p122 = por %p120, %p121
      %p124 = scmp.ne.s32.totalorder %s109, %s123
      %p125 = scmp.eq.s32.totalorder %s36, 0
      %p126 = por %p124, %p125
      %s128 = sadd.s32 %s127, 1
      %p131 = scmp.eq.s32.totalorder %s30, 1
      %p132 = scmp.ne.s32.totalorder %s127, %s129
      %p133 = scmp.eq.s32.totalorder %s30, 0
      %p134 = por %p132, %p133
      %p135 = scmp.ne.s32.totalorder %s127, %s129
      %p136 = scmp.eq.s32.totalorder %s35, 1
      %p137 = por %p135, %p136
      %p138 = scmp.ne.s32.totalorder %s129, %s130
      %p139 = scmp.eq.s32.totalorder %s35, 0
      %p140 = por %p138, %p139
      %p141 = scmp.ne.s32.totalorder %s129, %s130
      %p142 = scmp.eq.s32.totalorder %s36, 1
      %p143 = por %p141, %p142
      %p145 = scmp.ne.s32.totalorder %s130, %s144
      %p146 = scmp.eq.s32.totalorder %s36, 0
      %p147 = por %p145, %p146
      %s149 = sadd.s32 %s148, 1
      %p152 = scmp.eq.s32.totalorder %s30, 1
      %p153 = scmp.ne.s32.totalorder %s148, %s150
      %p154 = scmp.eq.s32.totalorder %s30, 0
      %p155 = por %p153, %p154
      %p156 = scmp.ne.s32.totalorder %s148, %s150
      %p157 = scmp.eq.s32.totalorder %s35, 1
      %p158 = por %p156, %p157
      %p159 = scmp.ne.s32.totalorder %s150, %s151
      %p160 = scmp.eq.s32.totalorder %s35, 0
      %p161 = por %p159, %p160
      %p162 = scmp.ne.s32.totalorder %s150, %s151
      %p163 = scmp.eq.s32.totalorder %s36, 1
      %p164 = por %p162, %p163
      %p166 = scmp.ne.s32.totalorder %s151, %s165
      %p167 = scmp.eq.s32.totalorder %s36, 0
      %p168 = por %p166, %p167
      %s170 = sadd.s32 %s169, 1
      %p173 = scmp.eq.s32.totalorder %s30, 1
      %p174 = scmp.ne.s32.totalorder %s169, %s171
      %p175 = scmp.eq.s32.totalorder %s30, 0
      %p176 = por %p174, %p175
      %p177 = scmp.ne.s32.totalorder %s169, %s171
      %p178 = scmp.eq.s32.totalorder %s35, 1
      %p179 = por %p177, %p178
      %p180 = scmp.ne.s32.totalorder %s171, %s172
      %p181 = scmp.eq.s32.totalorder %s35, 0
      %p182 = por %p180, %p181
      %p183 = scmp.ne.s32.totalorder %s171, %s172
      %p184 = scmp.eq.s32.totalorder %s36, 1
      %p185 = por %p183, %p184
      %p187 = scmp.ne.s32.totalorder %s172, %s186
      %p188 = scmp.eq.s32.totalorder %s36, 0
      %p189 = por %p187, %p188
      %s191 = sadd.s32 %s190, 1
      %p194 = scmp.eq.s32.totalorder %s30, 1
      %p195 = scmp.ne.s32.totalorder %s190, %s192
      %p196 = scmp.eq.s32.totalorder %s30, 0
      %p197 = por %p195, %p196
      %p198 = scmp.ne.s32.totalorder %s190, %s192
      %p199 = scmp.eq.s32.totalorder %s35, 1
      %p200 = por %p198, %p199
      %p201 = scmp.ne.s32.totalorder %s192, %s193
      %p202 = scmp.eq.s32.totalorder %s35, 0
      %p203 = por %p201, %p202
      %p204 = scmp.ne.s32.totalorder %s192, %s193
      %p205 = scmp.eq.s32.totalorder %s36, 1
      %p206 = por %p204, %p205
      %p208 = scmp.ne.s32.totalorder %s193, %s207
      %p209 = scmp.eq.s32.totalorder %s36, 0
      %p210 = por %p208, %p209
      %s212 = sadd.s32 %s211, 1
      %p215 = scmp.eq.s32.totalorder %s30, 1
      %p216 = scmp.ne.s32.totalorder %s211, %s213
      %p217 = scmp.eq.s32.totalorder %s30, 0
      %p218 = por %p216, %p217
      %p219 = scmp.ne.s32.totalorder %s211, %s213
      %p220 = scmp.eq.s32.totalorder %s35, 1
      %p221 = por %p219, %p220
      %p222 = scmp.ne.s32.totalorder %s213, %s214
      %p223 = scmp.eq.s32.totalorder %s35, 0
      %p224 = por %p222, %p223
      %p225 = scmp.ne.s32.totalorder %s213, %s214
      %p226 = scmp.eq.s32.totalorder %s36, 1
      %p227 = por %p225, %p226
      %p229 = scmp.ne.s32.totalorder %s214, %s228
      %p230 = scmp.eq.s32.totalorder %s36, 0
      %p231 = por %p229, %p230
      %s233 = sadd.s32 %s232, 1
      %p236 = scmp.eq.s32.totalorder %s30, 1
      %p237 = scmp.ne.s32.totalorder %s232, %s234
      %p238 = scmp.eq.s32.totalorder %s30, 0
      %p239 = por %p237, %p238
      %p240 = scmp.ne.s32.totalorder %s232, %s234
      %p241 = scmp.eq.s32.totalorder %s35, 1
      %p242 = por %p240, %p241
      %p243 = scmp.ne.s32.totalorder %s234, %s235
      %p244 = scmp.eq.s32.totalorder %s35, 0
      %p245 = por %p243, %p244
      %p246 = scmp.ne.s32.totalorder %s234, %s235
      %p247 = scmp.eq.s32.totalorder %s36, 1
      %p248 = por %p246, %p247
      %p250 = scmp.ne.s32.totalorder %s235, %s249
      %p251 = scmp.eq.s32.totalorder %s36, 0
      %p252 = por %p250, %p251
      %s254 = sadd.s32 %s253, 1
      %p257 = scmp.eq.s32.totalorder %s30, 1
      %p258 = scmp.ne.s32.totalorder %s253, %s255
      %p259 = scmp.eq.s32.totalorder %s30, 0
      %p260 = por %p258, %p259
      %p261 = scmp.ne.s32.totalorder %s253, %s255
      %p262 = scmp.eq.s32.totalorder %s35, 1
      %p263 = por %p261, %p262
      %p264 = scmp.ne.s32.totalorder %s255, %s256
      %p265 = scmp.eq.s32.totalorder %s35, 0
      %p266 = por %p264, %p265
      %p267 = scmp.ne.s32.totalorder %s255, %s256
      %p268 = scmp.eq.s32.totalorder %s36, 1
      %p269 = por %p267, %p268
      %p271 = scmp.ne.s32.totalorder %s256, %s270
      %p272 = scmp.eq.s32.totalorder %s36, 0
      %p273 = por %p271, %p272
      %s275 = sadd.s32 %s274, 1
      %p278 = scmp.eq.s32.totalorder %s30, 1
      %p279 = scmp.ne.s32.totalorder %s274, %s276
      %p280 = scmp.eq.s32.totalorder %s30, 0
      %p281 = por %p279, %p280
      %p282 = scmp.ne.s32.totalorder %s274, %s276
      %p283 = scmp.eq.s32.totalorder %s35, 1
      %p284 = por %p282, %p283
      %p285 = scmp.ne.s32.totalorder %s276, %s277
      %p286 = scmp.eq.s32.totalorder %s35, 0
      %p287 = por %p285, %p286
      %p288 = scmp.ne.s32.totalorder %s276, %s277
      %p289 = scmp.eq.s32.totalorder %s36, 1
      %p290 = por %p288, %p289
      %p292 = scmp.ne.s32.totalorder %s277, %s291
      %p293 = scmp.eq.s32.totalorder %s36, 0
      %p294 = por %p292, %p293
      %s295 = ssub.s32 %s30, %s37
      %p296 = scmp.eq.s32.totalorder %s295, 0
      %s298 = sadd.s32 %s297, 1
      %s299 = scalar_select %p296, %s297, %s298
      %p302 = pneg %p296
      %p303 = scmp.eq.s32.totalorder %s30, 1
      %p304 = por %p302, %p303
      %p305 = scmp.ne.s32.totalorder %s297, %s300
      %p306 = scmp.eq.s32.totalorder %s30, 0
      %p307 = por %p305, %p306
      %p308 = scmp.ne.s32.totalorder %s297, %s300
      %p309 = scmp.eq.s32.totalorder %s35, 1
      %p310 = por %p308, %p309
      %p311 = scmp.ne.s32.totalorder %s300, %s301
      %p312 = scmp.eq.s32.totalorder %s35, 0
      %p313 = por %p311, %p312
      %p314 = scmp.ne.s32.totalorder %s300, %s301
      %p315 = scmp.eq.s32.totalorder %s36, 1
      %p316 = por %p314, %p315
      %p318 = scmp.ne.s32.totalorder %s301, %s317
      %p319 = scmp.eq.s32.totalorder %s36, 0
      %p320 = por %p318, %p319
      %p321 = scmp.le.s32.totalorder 1, %s30
      %p322 = scmp.lt.s32.totalorder %s30, 3
      %p323 = pnand %p321, %p322
      %p324 = pneg %p323
      // Predicated region
      $region9: #{tpu_custom_call.1} parent=5 // pred_check
        _
      $region10: #{tpu_custom_call.1} parent=5 // pred_check_branch
        %326 = sbr.rel (%p323) target = $region12
      $region11: #{tpu_custom_call.1} parent=5 // pred_region
        %s327 = ssub.s32 %s30, 1
        // Predicated region
        $region13: #{tpu_custom_call.1} parent=11 // pred_check
          %p328 = pneg %p77
        $region14: #{tpu_custom_call.1} parent=11 // pred_check_branch
          %330 = sbr.rel (%p328) target = $region16
        $region15: #{tpu_custom_call.1} parent=11 // pred_region
          %s332 = ssub.s32 6144, 6144
          %333 = vsyncadd [#allocation9], %s332
          %s334 = sshll.u32 [#allocation8], 4
          %s335 = int_to_ptr.vmem [resolvable:$true] %s334
          %340 = dma.hbm_to_vmem [thread:$0]  %s1, 6144, %s335, [#allocation9], 384, 384, 24
        $region16: #{tpu_custom_call.1} parent=11 // pred_fallthru
          _
        // Predicated region
        $region17: #{tpu_custom_call.1} parent=11 // pred_check
          %p341 = pneg %p98
        $region18: #{tpu_custom_call.1} parent=11 // pred_check_branch
          %343 = sbr.rel (%p341) target = $region20
        $region19: #{tpu_custom_call.1} parent=11 // pred_region
          %s345 = ssub.s32 2048, 2048
          %346 = vsyncadd [#allocation9], %s345
          %s347 = sshll.u32 [#allocation10], 4
          %s348 = int_to_ptr.vmem [resolvable:$true] %s347
          %353 = dma.hbm_to_vmem [thread:$0]  %s2, 2048, %s348, [#allocation9], 128, 128, 8
        $region20: #{tpu_custom_call.1} parent=11 // pred_fallthru
          _
        // Predicated region
        $region21: #{tpu_custom_call.1} parent=11 // pred_check
          %p354 = pneg %p119
        $region22: #{tpu_custom_call.1} parent=11 // pred_check_branch
          %356 = sbr.rel (%p354) target = $region24
        $region23: #{tpu_custom_call.1} parent=11 // pred_region
          %s358 = ssub.s32 16, 16
          %359 = vsyncadd [#allocation12], %s358
          %s361 = sshll.u32 [#allocation11], 4
          %s362 = int_to_ptr.vmem [resolvable:$true] %s361
          %364 = dma.hbm_to_vmem [thread:$0]  %s3, 16, %s362, [#allocation12]
        $region24: #{tpu_custom_call.1} parent=11 // pred_fallthru
          _
        // Predicated region
        $region25: #{tpu_custom_call.1} parent=11 // pred_check
          %p365 = pneg %p140
        $region26: #{tpu_custom_call.1} parent=11 // pred_check_branch
          %367 = sbr.rel (%p365) target = $region28
        $region27: #{tpu_custom_call.1} parent=11 // pred_region
          %s369 = ssub.s32 4096, 4096
          %370 = vsyncadd [#allocation12], %s369
          %s371 = sshll.u32 [#allocation13], 4
          %s372 = int_to_ptr.vmem [resolvable:$true] %s371
          %377 = dma.hbm_to_vmem [thread:$0]  %s4, 4096, %s372, [#allocation12], 256, 256, 16
        $region28: #{tpu_custom_call.1} parent=11 // pred_fallthru
          _
        // Predicated region
        $region29: #{tpu_custom_call.1} parent=11 // pred_check
          %p378 = pneg %p161
        $region30: #{tpu_custom_call.1} parent=11 // pred_check_branch
          %380 = sbr.rel (%p378) target = $region32
        $region31: #{tpu_custom_call.1} parent=11 // pred_region
          %s382 = ssub.s32 32, 32
          %383 = vsyncadd [#allocation15], %s382
          %s385 = sshll.u32 [#allocation14], 4
          %s386 = int_to_ptr.vmem [resolvable:$true] %s385
          %388 = dma.hbm_to_vmem [thread:$0]  %s5, 32, %s386, [#allocation15]
        $region32: #{tpu_custom_call.1} parent=11 // pred_fallthru
          _
        // Predicated region
        $region33: #{tpu_custom_call.1} parent=11 // pred_check
          %p389 = pneg %p182
        $region34: #{tpu_custom_call.1} parent=11 // pred_check_branch
          %391 = sbr.rel (%p389) target = $region36
        $region35: #{tpu_custom_call.1} parent=11 // pred_region
          %s393 = ssub.s32 4096, 4096
          %394 = vsyncadd [#allocation15], %s393
          %s395 = sshll.u32 [#allocation16], 4
          %s396 = int_to_ptr.vmem [resolvable:$true] %s395
          %401 = dma.hbm_to_vmem [thread:$0]  %s6, 4096, %s396, [#allocation15], 128, 128, 8
        $region36: #{tpu_custom_call.1} parent=11 // pred_fallthru
          _
        // Predicated region
        $region37: #{tpu_custom_call.1} parent=11 // pred_check
          %p402 = pneg %p203
        $region38: #{tpu_custom_call.1} parent=11 // pred_check_branch
          %404 = sbr.rel (%p402) target = $region40
        $region39: #{tpu_custom_call.1} parent=11 // pred_region
          %s406 = ssub.s32 16, 16
          %407 = vsyncadd [#allocation18], %s406
          %s409 = sshll.u32 [#allocation17], 4
          %s410 = int_to_ptr.vmem [resolvable:$true] %s409
          %412 = dma.hbm_to_vmem [thread:$0]  %s7, 16, %s410, [#allocation18]
        $region40: #{tpu_custom_call.1} parent=11 // pred_fallthru
          _
        // Predicated region
        $region41: #{tpu_custom_call.1} parent=11 // pred_check
          %p413 = pneg %p224
        $region42: #{tpu_custom_call.1} parent=11 // pred_check_branch
          %415 = sbr.rel (%p413) target = $region44
        $region43: #{tpu_custom_call.1} parent=11 // pred_region
          %s417 = ssub.s32 16, 16
          %418 = vsyncadd [#allocation18], %s417
          %s420 = sshll.u32 [#allocation19], 4
          %s421 = int_to_ptr.vmem [resolvable:$true] %s420
          %423 = dma.hbm_to_vmem [thread:$0]  %s8, 16, %s421, [#allocation18]
        $region44: #{tpu_custom_call.1} parent=11 // pred_fallthru
          _
        // Predicated region
        $region45: #{tpu_custom_call.1} parent=11 // pred_check
          %p424 = pneg %p245
        $region46: #{tpu_custom_call.1} parent=11 // pred_check_branch
          %426 = sbr.rel (%p424) target = $region48
        $region47: #{tpu_custom_call.1} parent=11 // pred_region
          %s428 = ssub.s32 16, 16
          %429 = vsyncadd [#allocation21], %s428
          %s431 = sshll.u32 [#allocation20], 4
          %s432 = int_to_ptr.vmem [resolvable:$true] %s431
          %434 = dma.hbm_to_vmem [thread:$0]  %s9, 16, %s432, [#allocation21]
        $region48: #{tpu_custom_call.1} parent=11 // pred_fallthru
          _
        // Predicated region
        $region49: #{tpu_custom_call.1} parent=11 // pred_check
          %p435 = pneg %p266
        $region50: #{tpu_custom_call.1} parent=11 // pred_check_branch
          %437 = sbr.rel (%p435) target = $region52
        $region51: #{tpu_custom_call.1} parent=11 // pred_region
          %s439 = ssub.s32 16, 16
          %440 = vsyncadd [#allocation21], %s439
          %s442 = sshll.u32 [#allocation22], 4
          %s443 = int_to_ptr.vmem [resolvable:$true] %s442
          %445 = dma.hbm_to_vmem [thread:$0]  %s10, 16, %s443, [#allocation21]
        $region52: #{tpu_custom_call.1} parent=11 // pred_fallthru
          _
        // Predicated region
        $region53: #{tpu_custom_call.1} parent=11 // pred_check
          %p446 = pneg %p287
        $region54: #{tpu_custom_call.1} parent=11 // pred_check_branch
          %448 = sbr.rel (%p446) target = $region56
        $region55: #{tpu_custom_call.1} parent=11 // pred_region
          %s450 = ssub.s32 16, 16
          %451 = vsyncadd [#allocation24], %s450
          %s453 = sshll.u32 [#allocation23], 4
          %s454 = int_to_ptr.vmem [resolvable:$true] %s453
          %456 = dma.hbm_to_vmem [thread:$0]  %s11, 16, %s454, [#allocation24]
        $region56: #{tpu_custom_call.1} parent=11 // pred_fallthru
          _
      $region12: #{tpu_custom_call.1} parent=5 // pred_fallthru
        _
      %p457 = scmp.lt.s32.totalorder %s30, 2
      // Predicated region
      $region57: #{tpu_custom_call.1} parent=5 // pred_check
        %p458 = pneg %p457
      $region58: #{tpu_custom_call.1} parent=5 // pred_check_branch
        %460 = sbr.rel (%p458) target = $region60
      $region59: #{tpu_custom_call.1} parent=5 // pred_region
        // Predicated region
        $region61: #{tpu_custom_call.1} parent=59 // pred_check
          %p461 = pneg %p50
        $region62: #{tpu_custom_call.1} parent=59 // pred_check_branch
          %463 = sbr.rel (%p461) target = $region64
        $region63: #{tpu_custom_call.1} parent=59 // pred_region
          %s464 = sand.u32 %s40, 1
          %s465 = scalar_lea.sflag [#allocation6], %s464
          %s466 = sand.u32 %s40, 1
          %s467 = smul.addr %s466, 16
          %s468 = scalar_lea.vmem [#allocation5], %s467
          %s470 = ssub.s32 256, 256
          %471 = vsyncadd %s465, %s470
          %s472 = smul.addr %s30, 2
          %s473 = smul.addr %s472, 128
          %s474 = scalar_lea.hbm %s0, %s473
          %s475 = sshll.u32 %s468, 4
          %s476 = int_to_ptr.vmem [resolvable:$true] %s475
          %481 = dma.hbm_to_vmem [thread:$0]  %s474, 256, %s476, %s465, 128, 128, 8
        $region64: #{tpu_custom_call.1} parent=59 // pred_fallthru
          _
      $region60: #{tpu_custom_call.1} parent=5 // pred_fallthru
        _
      %p482 = scmp.le.s32.totalorder 1, %s30
      %p483 = scmp.lt.s32.totalorder %s30, 3
      %p484 = pnand %p482, %p483
      %p485 = pneg %p484
      // Predicated region
      $region65: #{tpu_custom_call.1} parent=5 // pred_check
        _
      $region66: #{tpu_custom_call.1} parent=5 // pred_check_branch
        %487 = sbr.rel (%p484) target = $region68
      $region67: #{tpu_custom_call.1} parent=5 // pred_region
        %s488 = ssub.s32 %s30, 1
        %s489 = sand.u32 %s43, 1
        %s490 = scalar_lea.sflag [#allocation6], %s489
        %s491 = sand.u32 %s43, 1
        %s492 = smul.addr %s491, 16
        %s493 = scalar_lea.vmem [#allocation5], %s492
        // Predicated region
        $region69: #{tpu_custom_call.1} parent=67 // pred_check
          %p494 = pneg %p56
        $region70: #{tpu_custom_call.1} parent=67 // pred_check_branch
          %496 = sbr.rel (%p494) target = $region72
        $region71: #{tpu_custom_call.1} parent=67 // pred_region
          %497 = dma.done %s490, 256
        $region72: #{tpu_custom_call.1} parent=67 // pred_fallthru
          _
        // Predicated region
        $region73: #{tpu_custom_call.1} parent=67 // pred_check
          %p498 = pneg %p77
        $region74: #{tpu_custom_call.1} parent=67 // pred_check_branch
          %500 = sbr.rel (%p498) target = $region76
        $region75: #{tpu_custom_call.1} parent=67 // pred_region
          %501 = dma.done [#allocation9], 6144
        $region76: #{tpu_custom_call.1} parent=67 // pred_fallthru
          _
        // Predicated region
        $region77: #{tpu_custom_call.1} parent=67 // pred_check
          %p502 = pneg %p98
        $region78: #{tpu_custom_call.1} parent=67 // pred_check_branch
          %504 = sbr.rel (%p502) target = $region80
        $region79: #{tpu_custom_call.1} parent=67 // pred_region
          %505 = dma.done [#allocation9], 2048
        $region80: #{tpu_custom_call.1} parent=67 // pred_fallthru
          _
        // Predicated region
        $region81: #{tpu_custom_call.1} parent=67 // pred_check
          %p506 = pneg %p119
        $region82: #{tpu_custom_call.1} parent=67 // pred_check_branch
          %508 = sbr.rel (%p506) target = $region84
        $region83: #{tpu_custom_call.1} parent=67 // pred_region
          %509 = dma.done [#allocation12], 16
        $region84: #{tpu_custom_call.1} parent=67 // pred_fallthru
          _
        // Predicated region
        $region85: #{tpu_custom_call.1} parent=67 // pred_check
          %p510 = pneg %p140
        $region86: #{tpu_custom_call.1} parent=67 // pred_check_branch
          %512 = sbr.rel (%p510) target = $region88
        $region87: #{tpu_custom_call.1} parent=67 // pred_region
          %513 = dma.done [#allocation12], 4096
        $region88: #{tpu_custom_call.1} parent=67 // pred_fallthru
          _
        // Predicated region
        $region89: #{tpu_custom_call.1} parent=67 // pred_check
          %p514 = pneg %p161
        $region90: #{tpu_custom_call.1} parent=67 // pred_check_branch
          %516 = sbr.rel (%p514) target = $region92
        $region91: #{tpu_custom_call.1} parent=67 // pred_region
          %517 = dma.done [#allocation15], 32
        $region92: #{tpu_custom_call.1} parent=67 // pred_fallthru
          _
        // Predicated region
        $region93: #{tpu_custom_call.1} parent=67 // pred_check
          %p518 = pneg %p182
        $region94: #{tpu_custom_call.1} parent=67 // pred_check_branch
          %520 = sbr.rel (%p518) target = $region96
        $region95: #{tpu_custom_call.1} parent=67 // pred_region
          %521 = dma.done [#allocation15], 4096
        $region96: #{tpu_custom_call.1} parent=67 // pred_fallthru
          _
        // Predicated region
        $region97: #{tpu_custom_call.1} parent=67 // pred_check
          %p522 = pneg %p203
        $region98: #{tpu_custom_call.1} parent=67 // pred_check_branch
          %524 = sbr.rel (%p522) target = $region100
        $region99: #{tpu_custom_call.1} parent=67 // pred_region
          %525 = dma.done [#allocation18], 16
        $region100: #{tpu_custom_call.1} parent=67 // pred_fallthru
          _
        // Predicated region
        $region101: #{tpu_custom_call.1} parent=67 // pred_check
          %p526 = pneg %p224
        $region102: #{tpu_custom_call.1} parent=67 // pred_check_branch
          %528 = sbr.rel (%p526) target = $region104
        $region103: #{tpu_custom_call.1} parent=67 // pred_region
          %529 = dma.done [#allocation18], 16
        $region104: #{tpu_custom_call.1} parent=67 // pred_fallthru
          _
        // Predicated region
        $region105: #{tpu_custom_call.1} parent=67 // pred_check
          %p530 = pneg %p245
        $region106: #{tpu_custom_call.1} parent=67 // pred_check_branch
          %532 = sbr.rel (%p530) target = $region108
        $region107: #{tpu_custom_call.1} parent=67 // pred_region
          %533 = dma.done [#allocation21], 16
        $region108: #{tpu_custom_call.1} parent=67 // pred_fallthru
          _
        // Predicated region
        $region109: #{tpu_custom_call.1} parent=67 // pred_check
          %p534 = pneg %p266
        $region110: #{tpu_custom_call.1} parent=67 // pred_check_branch
          %536 = sbr.rel (%p534) target = $region112
        $region111: #{tpu_custom_call.1} parent=67 // pred_region
          %537 = dma.done [#allocation21], 16
        $region112: #{tpu_custom_call.1} parent=67 // pred_fallthru
          _
        // Predicated region
        $region113: #{tpu_custom_call.1} parent=67 // pred_check
          %p538 = pneg %p287
        $region114: #{tpu_custom_call.1} parent=67 // pred_check_branch
          %540 = sbr.rel (%p538) target = $region116
        $region115: #{tpu_custom_call.1} parent=67 // pred_region
          %541 = dma.done [#allocation24], 16
        $region116: #{tpu_custom_call.1} parent=67 // pred_fallthru
          _
        %s542 = sand.u32 %s43, 1
        %s543 = scalar_lea.sflag [#allocation6], %s542
        %s544 = sand.u32 %s43, 1
        %s545 = smul.addr %s544, 16
        %s546 = scalar_lea.vmem [#allocation5], %s545
        %p547 = pneg %p56
        %p548 = pneg %p53
        %p549 = pneg %p77
        %p550 = pneg %p74
        %p551 = pneg %p98
        %p552 = pneg %p95
        %p553 = pneg %p119
        %p554 = pneg %p116
        %p555 = pneg %p140
        %p556 = pneg %p137
        %p557 = pneg %p161
        %p558 = pneg %p158
        %p559 = pneg %p182
        %p560 = pneg %p179
        %p561 = pneg %p203
        %p562 = pneg %p200
        %p563 = pneg %p224
        %p564 = pneg %p221
        %p565 = pneg %p245
        %p566 = pneg %p242
        %p567 = pneg %p266
        %p568 = pneg %p263
        %p569 = pneg %p287
        %p570 = pneg %p284
        %p571 = pneg %p313
        %p572 = pneg %p310
        %s573 = sand.u32 %s300, 1
        %s574 = scalar_lea.sflag [#allocation7], %s573
        %s575 = sand.u32 %s300, 1
        %s576 = smul.addr %s575, 16
        %s577 = scalar_lea.vmem [#allocation25], %s576
        %v578 = vld [vmem:[%s493] sm:$0xff]
        %v579 = vld [vmem:[%s493 + $0x8] sm:$0xff]
        %v580 = vld [vmem:[#allocation8] sm:$0xff]
        %v581 = vld [vmem:[#allocation8 + $0x8] sm:$0xff]
        %v582 = vld [vmem:[#allocation8 + $0x10] sm:$0xff]
        %v583 = vld [vmem:[#allocation8 + $0x18] sm:$0xff]
        %v584 = vld [vmem:[#allocation8 + $0x20] sm:$0xff]
        %v585 = vld [vmem:[#allocation8 + $0x28] sm:$0xff]
        %v586 = vld [vmem:[#allocation8 + $0x30] sm:$0xff]
        %v587 = vld [vmem:[#allocation8 + $0x38] sm:$0xff]
        %v588 = vld [vmem:[#allocation8 + $0x40] sm:$0xff]
        %v589 = vld [vmem:[#allocation8 + $0x48] sm:$0xff]
        %v590 = vld [vmem:[#allocation8 + $0x50] sm:$0xff]
        %v591 = vld [vmem:[#allocation8 + $0x58] sm:$0xff]
        %v592 = vld [vmem:[#allocation8 + $0x60] sm:$0xff]
        %v593 = vld [vmem:[#allocation8 + $0x68] sm:$0xff]
        %v594 = vld [vmem:[#allocation8 + $0x70] sm:$0xff]
        %v595 = vld [vmem:[#allocation8 + $0x78] sm:$0xff]
        %v596 = vld [vmem:[#allocation8 + $0x80] sm:$0xff]
        %v597 = vld [vmem:[#allocation8 + $0x88] sm:$0xff]
        %v598 = vld [vmem:[#allocation8 + $0x90] sm:$0xff]
        %v599 = vld [vmem:[#allocation8 + $0x98] sm:$0xff]
        %v600 = vld [vmem:[#allocation8 + $0xa0] sm:$0xff]
        %v601 = vld [vmem:[#allocation8 + $0xa8] sm:$0xff]
        %v602 = vld [vmem:[#allocation8 + $0xb0] sm:$0xff]
        %v603 = vld [vmem:[#allocation8 + $0xb8] sm:$0xff]
        %v604 = vld [vmem:[#allocation8 + $0xc0] sm:$0xff]
        %v605 = vld [vmem:[#allocation8 + $0xc8] sm:$0xff]
        %v606 = vld [vmem:[#allocation8 + $0xd0] sm:$0xff]
        %v607 = vld [vmem:[#allocation8 + $0xd8] sm:$0xff]
        %v608 = vld [vmem:[#allocation8 + $0xe0] sm:$0xff]
        %v609 = vld [vmem:[#allocation8 + $0xe8] sm:$0xff]
        %v610 = vld [vmem:[#allocation8 + $0xf0] sm:$0xff]
        %v611 = vld [vmem:[#allocation8 + $0xf8] sm:$0xff]
        %v612 = vld [vmem:[#allocation8 + $0x100] sm:$0xff]
        %v613 = vld [vmem:[#allocation8 + $0x108] sm:$0xff]
        %v614 = vld [vmem:[#allocation8 + $0x110] sm:$0xff]
        %v615 = vld [vmem:[#allocation8 + $0x118] sm:$0xff]
        %v616 = vld [vmem:[#allocation8 + $0x120] sm:$0xff]
        %v617 = vld [vmem:[#allocation8 + $0x128] sm:$0xff]
        %v618 = vld [vmem:[#allocation8 + $0x130] sm:$0xff]
        %v619 = vld [vmem:[#allocation8 + $0x138] sm:$0xff]
        %v620 = vld [vmem:[#allocation8 + $0x140] sm:$0xff]
        %v621 = vld [vmem:[#allocation8 + $0x148] sm:$0xff]
        %v622 = vld [vmem:[#allocation8 + $0x150] sm:$0xff]
        %v623 = vld [vmem:[#allocation8 + $0x158] sm:$0xff]
        %v624 = vld [vmem:[#allocation8 + $0x160] sm:$0xff]
        %v625 = vld [vmem:[#allocation8 + $0x168] sm:$0xff]
        %v626 = vld [vmem:[#allocation8 + $0x170] sm:$0xff]
        %v627 = vld [vmem:[#allocation8 + $0x178] sm:$0xff]
        %628 = vmatprep.subr.mxu0 %v581
        %629 = vmatpush1.msra.mxu0 %v580
        %630 = vmatprep.subr.mxu0 %v584
        %631 = vmatpush1.msra.mxu0 %v583
        %632 = vmatprep.subr.mxu0 %v587
        %633 = vmatpush1.msra.mxu0 %v586
        %634 = vmatprep.subr.mxu0 %v590
        %635 = vmatpush1.msra.mxu0 %v589
        %636 = vmatprep.subr.mxu0 %v593
        %637 = vmatpush1.msra.mxu0 %v592
        %638 = vmatprep.subr.mxu0 %v596
        %639 = vmatpush1.msra.mxu0 %v595
        %640 = vmatprep.subr.mxu0 %v599
        %641 = vmatpush1.msra.mxu0 %v598
        %642 = vmatprep.subr.mxu0 %v602
        %643 = vmatpush1.msra.mxu0 %v601
        %644 = vmatprep.subr.mxu0 %v605
        %645 = vmatpush1.msra.mxu0 %v604
        %646 = vmatprep.subr.mxu0 %v608
        %647 = vmatpush1.msra.mxu0 %v607
        %648 = vmatprep.subr.mxu0 %v611
        %649 = vmatpush1.msra.mxu0 %v610
        %650 = vmatprep.subr.mxu0 %v614
        %651 = vmatpush1.msra.mxu0 %v613
        %652 = vmatprep.subr.mxu0 %v617
        %653 = vmatpush1.msra.mxu0 %v616
        %654 = vmatprep.subr.mxu0 %v620
        %655 = vmatpush1.msra.mxu0 %v619
        %656 = vmatprep.subr.mxu0 %v623
        %657 = vmatpush1.msra.mxu0 %v622
        %658 = vmatprep.subr.mxu0 %v626
        %659 = vmatpush1.msra.mxu0 %v625
        %660 = vmatprep.subr.mxu0 0.0
        %661 = vmatpush1.msra.mxu0 0.0
        %662 = vmatprep.subr.mxu0 0.0
        %663 = vmatpush1.msra.mxu0 0.0
        %664 = vmatprep.subr.mxu0 0.0
        %665 = vmatpush1.msra.mxu0 0.0
        %666 = vmatprep.subr.mxu0 0.0
        %667 = vmatpush1.msra.mxu0 0.0
        %668 = vmatprep.subr.mxu0 0.0
        %669 = vmatpush1.msra.mxu0 0.0
        %670 = vmatprep.subr.mxu0 0.0
        %671 = vmatpush1.msra.mxu0 0.0
        %672 = vmatprep.subr.mxu0 0.0
        %673 = vmatpush1.msra.mxu0 0.0
        %674 = vmatprep.subr.mxu0 0.0
        %675 = vmatpush1.msra.mxu0 0.0
        %676 = vmatprep.subr.mxu0 0.0
        %677 = vmatpush1.msra.mxu0 0.0
        %678 = vmatprep.subr.mxu0 0.0
        %679 = vmatpush1.msra.mxu0 0.0
        %680 = vmatprep.subr.mxu0 0.0
        %681 = vmatpush1.msra.mxu0 0.0
        %682 = vmatprep.subr.mxu0 0.0
        %683 = vmatpush1.msra.mxu0 0.0
        %684 = vmatprep.subr.mxu0 0.0
        %685 = vmatpush1.msra.mxu0 0.0
        %686 = vmatprep.subr.mxu0 0.0
        %687 = vmatpush1.msra.mxu0 0.0
        %688 = vmatprep.subr.mxu0 0.0
        %689 = vmatpush1.msra.mxu0 0.0
        %690 = vmatprep.subr.mxu0 0.0
        %691 = vmatpush1.msra.mxu0 0.0
        %692 = vmatprep.mubr.f32.mxu0 0.0
        %693 = vmatmul.mubr.f32.gmra.mrb[0].mxu0 %v578
        %v694 = vpop.f32.mrb[0].mxu0
        %v695 = vadd.f32 0.0, %v694
        %v696 = vpop.f32.mrb[0].mxu0
        %v697 = vadd.f32 0.0, %v696
        %698 = vmatprep.mubr.f32.mxu0 0.0
        %699 = vmatmul.mubr.f32.gmra.mrb[0].mxu0 %v579
        %v700 = vpop.f32.mrb[0].mxu0
        %v701 = vadd.f32 0.0, %v700
        %v702 = vpop.f32.mrb[0].mxu0
        %v703 = vadd.f32 0.0, %v702
        %704 = vdwg.mxu0
        %705 = vmatprep.subr.mxu0 0.0
        %706 = vmatpush1.msra.mxu0 %v582
        %707 = vmatprep.subr.mxu0 0.0
        %708 = vmatpush1.msra.mxu0 %v585
        %709 = vmatprep.subr.mxu0 0.0
        %710 = vmatpush1.msra.mxu0 %v588
        %711 = vmatprep.subr.mxu0 0.0
        %712 = vmatpush1.msra.mxu0 %v591
        %713 = vmatprep.subr.mxu0 0.0
        %714 = vmatpush1.msra.mxu0 %v594
        %715 = vmatprep.subr.mxu0 0.0
        %716 = vmatpush1.msra.mxu0 %v597
        %717 = vmatprep.subr.mxu0 0.0
        %718 = vmatpush1.msra.mxu0 %v600
        %719 = vmatprep.subr.mxu0 0.0
        %720 = vmatpush1.msra.mxu0 %v603
        %721 = vmatprep.subr.mxu0 0.0
        %722 = vmatpush1.msra.mxu0 %v606
        %723 = vmatprep.subr.mxu0 0.0
        %724 = vmatpush1.msra.mxu0 %v609
        %725 = vmatprep.subr.mxu0 0.0
        %726 = vmatpush1.msra.mxu0 %v612
        %727 = vmatprep.subr.mxu0 0.0
        %728 = vmatpush1.msra.mxu0 %v615
        %729 = vmatprep.subr.mxu0 0.0
        %730 = vmatpush1.msra.mxu0 %v618
        %731 = vmatprep.subr.mxu0 0.0
        %732 = vmatpush1.msra.mxu0 %v621
        %733 = vmatprep.subr.mxu0 0.0
        %734 = vmatpush1.msra.mxu0 %v624
        %735 = vmatprep.subr.mxu0 0.0
        %736 = vmatpush1.msra.mxu0 %v627
        %737 = vmatprep.subr.mxu0 0.0
        %738 = vmatpush1.msra.mxu0 0.0
        %739 = vmatprep.subr.mxu0 0.0
        %740 = vmatpush1.msra.mxu0 0.0
        %741 = vmatprep.subr.mxu0 0.0
        %742 = vmatpush1.msra.mxu0 0.0
        %743 = vmatprep.subr.mxu0 0.0
        %744 = vmatpush1.msra.mxu0 0.0
        %745 = vmatprep.subr.mxu0 0.0
        %746 = vmatpush1.msra.mxu0 0.0
        %747 = vmatprep.subr.mxu0 0.0
        %748 = vmatpush1.msra.mxu0 0.0
        %749 = vmatprep.subr.mxu0 0.0
        %750 = vmatpush1.msra.mxu0 0.0
        %751 = vmatprep.subr.mxu0 0.0
        %752 = vmatpush1.msra.mxu0 0.0
        %753 = vmatprep.subr.mxu0 0.0
        %754 = vmatpush1.msra.mxu0 0.0
        %755 = vmatprep.subr.mxu0 0.0
        %756 = vmatpush1.msra.mxu0 0.0
        %757 = vmatprep.subr.mxu0 0.0
        %758 = vmatpush1.msra.mxu0 0.0
        %759 = vmatprep.subr.mxu0 0.0
        %760 = vmatpush1.msra.mxu0 0.0
        %761 = vmatprep.subr.mxu0 0.0
        %762 = vmatpush1.msra.mxu0 0.0
        %763 = vmatprep.subr.mxu0 0.0
        %764 = vmatpush1.msra.mxu0 0.0
        %765 = vmatprep.subr.mxu0 0.0
        %766 = vmatpush1.msra.mxu0 0.0
        %767 = vmatprep.subr.mxu0 0.0
        %768 = vmatpush1.msra.mxu0 0.0
        %769 = vmatprep.mubr.f32.mxu0 0.0
        %770 = vmatmul.mubr.f32.gmra.mrb[0].mxu0 %v578
        %v771 = vpop.f32.mrb[0].mxu0
        %v772 = vadd.f32 0.0, %v771
        %v773 = vpop.f32.mrb[0].mxu0
        %774 = vmatprep.mubr.f32.mxu0 0.0
        %775 = vmatmul.mubr.f32.gmra.mrb[0].mxu0 %v579
        %v776 = vpop.f32.mrb[0].mxu0
        %v777 = vadd.f32 0.0, %v776
        %v778 = vpop.f32.mrb[0].mxu0
        %779 = vdwg.mxu0
        %v780 = vmul.f32 %v695, 0.17677669
        %v781 = vmul.f32 %v701, 0.17677669
        %vm782 = vcmask 261120
        %783 = vst.msk [vmem:[#allocation2] sm:$0xff] %vm782, %v780
        %784 = vst.msk [vmem:[#allocation2 + $0x8] sm:$0xff] %vm782, %v781
        %785 = vst.msk [vmem:[#allocation3] sm:$0xff] %vm782, %v697
        %786 = vst.msk [vmem:[#allocation3 + $0x8] sm:$0xff] %vm782, %v703
        %787 = vst.msk [vmem:[#allocation4] sm:$0xff] %vm782, %v772
        %788 = vst.msk [vmem:[#allocation4 + $0x8] sm:$0xff] %vm782, %v777
        %791 = vrot.lane.b32.xlu0 %v780, 96
        %v792 = vpop.permute.xlu0 %791
        %793 = vrot.lane.b32.xlu0 %v781, 96
        %v794 = vpop.permute.xlu0 %793
        %s797 = scalar_lea.vmem [#allocation2], 16
        %798 = vst.msk [vmem:[%s797] sm:$0xff] %vm782, %v792
        %799 = vst.msk [vmem:[%s797 + $0x8] sm:$0xff] %vm782, %v794
        %802 = vrot.lane.b32.xlu0 %v697, 96
        %v803 = vpop.permute.xlu0 %802
        %804 = vrot.lane.b32.xlu0 %v703, 96
        %v805 = vpop.permute.xlu0 %804
        %s808 = scalar_lea.vmem [#allocation3], 16
        %809 = vst.msk [vmem:[%s808] sm:$0xff] %vm782, %v803
        %810 = vst.msk [vmem:[%s808 + $0x8] sm:$0xff] %vm782, %v805
        %813 = vrot.lane.b32.xlu0 %v772, 96
        %v814 = vpop.permute.xlu0 %813
        %815 = vrot.lane.b32.xlu0 %v777, 96
        %v816 = vpop.permute.xlu0 %815
        %s819 = scalar_lea.vmem [#allocation4], 16
        %820 = vst.msk [vmem:[%s819] sm:$0xff] %vm782, %v814
        %821 = vst.msk [vmem:[%s819 + $0x8] sm:$0xff] %vm782, %v816
        %822 = vrot.lane.b32.xlu0 %v780, 64
        %v823 = vpop.permute.xlu0 %822
        %824 = vrot.lane.b32.xlu0 %v781, 64
        %v825 = vpop.permute.xlu0 %824
        %s828 = scalar_lea.vmem [#allocation2], 32
        %829 = vst.msk [vmem:[%s828] sm:$0xff] %vm782, %v823
        %830 = vst.msk [vmem:[%s828 + $0x8] sm:$0xff] %vm782, %v825
        %831 = vrot.lane.b32.xlu0 %v697, 64
        %v832 = vpop.permute.xlu0 %831
        %833 = vrot.lane.b32.xlu0 %v703, 64
        %v834 = vpop.permute.xlu0 %833
        %s837 = scalar_lea.vmem [#allocation3], 32
        %838 = vst.msk [vmem:[%s837] sm:$0xff] %vm782, %v832
        %839 = vst.msk [vmem:[%s837 + $0x8] sm:$0xff] %vm782, %v834
        %840 = vrot.lane.b32.xlu0 %v772, 64
        %v841 = vpop.permute.xlu0 %840
        %842 = vrot.lane.b32.xlu0 %v777, 64
        %v843 = vpop.permute.xlu0 %842
        %s846 = scalar_lea.vmem [#allocation4], 32
        %847 = vst.msk [vmem:[%s846] sm:$0xff] %vm782, %v841
        %848 = vst.msk [vmem:[%s846 + $0x8] sm:$0xff] %vm782, %v843
        %849 = vrot.lane.b32.xlu0 %v780, 32
        %v850 = vpop.permute.xlu0 %849
        %851 = vrot.lane.b32.xlu0 %v781, 32
        %v852 = vpop.permute.xlu0 %851
        %s855 = scalar_lea.vmem [#allocation2], 48
        %856 = vst.msk [vmem:[%s855] sm:$0xff] %vm782, %v850
        %857 = vst.msk [vmem:[%s855 + $0x8] sm:$0xff] %vm782, %v852
        %858 = vrot.lane.b32.xlu0 %v697, 32
        %v859 = vpop.permute.xlu0 %858
        %860 = vrot.lane.b32.xlu0 %v703, 32
        %v861 = vpop.permute.xlu0 %860
        %s864 = scalar_lea.vmem [#allocation3], 48
        %865 = vst.msk [vmem:[%s864] sm:$0xff] %vm782, %v859
        %866 = vst.msk [vmem:[%s864 + $0x8] sm:$0xff] %vm782, %v861
        %867 = vrot.lane.b32.xlu0 %v772, 32
        %v868 = vpop.permute.xlu0 %867
        %869 = vrot.lane.b32.xlu0 %v777, 32
        %v870 = vpop.permute.xlu0 %869
        %s873 = scalar_lea.vmem [#allocation4], 48
        %874 = vst.msk [vmem:[%s873] sm:$0xff] %vm782, %v868
        %875 = vst.msk [vmem:[%s873 + $0x8] sm:$0xff] %vm782, %v870
        %v876 = vld [vmem:[#allocation2] sm:$0xff]
        %v877 = vld [vmem:[#allocation2 + $0x8] sm:$0xff]
        %v878 = vld [vmem:[#allocation2 + $0x10] sm:$0xff]
        %v879 = vld [vmem:[#allocation2 + $0x18] sm:$0xff]
        %v880 = vld [vmem:[#allocation2 + $0x20] sm:$0xff]
        %v881 = vld [vmem:[#allocation2 + $0x28] sm:$0xff]
        %v882 = vld [vmem:[#allocation2 + $0x30] sm:$0xff]
        %v883 = vld [vmem:[#allocation2 + $0x38] sm:$0xff]
        %v884 = vld [vmem:[#allocation3] sm:$0xff]
        %v885 = vld [vmem:[#allocation3 + $0x8] sm:$0xff]
        %v886 = vld [vmem:[#allocation3 + $0x10] sm:$0xff]
        %v887 = vld [vmem:[#allocation3 + $0x18] sm:$0xff]
        %v888 = vld [vmem:[#allocation3 + $0x20] sm:$0xff]
        %v889 = vld [vmem:[#allocation3 + $0x28] sm:$0xff]
        %v890 = vld [vmem:[#allocation3 + $0x30] sm:$0xff]
        %v891 = vld [vmem:[#allocation3 + $0x38] sm:$0xff]
        %v892 = vld [vmem:[#allocation4] sm:$0xff]
        %v893 = vld [vmem:[#allocation4 + $0x8] sm:$0xff]
        %v894 = vld [vmem:[#allocation4 + $0x10] sm:$0xff]
        %v895 = vld [vmem:[#allocation4 + $0x18] sm:$0xff]
        %v896 = vld [vmem:[#allocation4 + $0x20] sm:$0xff]
        %v897 = vld [vmem:[#allocation4 + $0x28] sm:$0xff]
        %v898 = vld [vmem:[#allocation4 + $0x30] sm:$0xff]
        %v899 = vld [vmem:[#allocation4 + $0x38] sm:$0xff]
        %v901 = vsel %vm782, %v876, 0
        %v904 = vsel %vm782, %v877, 0
        %v907 = vsel %vm782, %v884, 0
        %v910 = vsel %vm782, %v885, 0
        %912 = vmatprep.subr.mxu0 0.0
        %913 = vmatpush1.xpose.msra.mxu0 %v907
        %914 = vmatprep.subr.mxu0 0.0
        %915 = vmatpush1.xpose.msra.mxu0 %v910
        %916 = vmatprep.subr.mxu0 0.0
        %917 = vmatpush1.xpose.msra.mxu0 0.0
        %918 = vmatprep.subr.mxu0 0.0
        %919 = vmatpush1.xpose.msra.mxu0 0.0
        %920 = vmatprep.subr.mxu0 0.0
        %921 = vmatpush1.xpose.msra.mxu0 0.0
        %922 = vmatprep.subr.mxu0 0.0
        %923 = vmatpush1.xpose.msra.mxu0 0.0
        %924 = vmatprep.subr.mxu0 0.0
        %925 = vmatpush1.xpose.msra.mxu0 0.0
        %926 = vmatprep.subr.mxu0 0.0
        %927 = vmatpush1.xpose.msra.mxu0 0.0
        %928 = vmatprep.subr.mxu0 0.0
        %929 = vmatpush1.xpose.msra.mxu0 0.0
        %930 = vmatprep.subr.mxu0 0.0
        %931 = vmatpush1.xpose.msra.mxu0 0.0
        %932 = vmatprep.subr.mxu0 0.0
        %933 = vmatpush1.xpose.msra.mxu0 0.0
        %934 = vmatprep.subr.mxu0 0.0
        %935 = vmatpush1.xpose.msra.mxu0 0.0
        %936 = vmatprep.subr.mxu0 0.0
        %937 = vmatpush1.xpose.msra.mxu0 0.0
        %938 = vmatprep.subr.mxu0 0.0
        %939 = vmatpush1.xpose.msra.mxu0 0.0
        %940 = vmatprep.subr.mxu0 0.0
        %941 = vmatpush1.xpose.msra.mxu0 0.0
        %942 = vmatprep.subr.mxu0 0.0
        %943 = vmatpush1.xpose.msra.mxu0 0.0
        %944 = vmatprep.subr.mxu0 0.0
        %945 = vmatpush1.xpose.msra.mxu0 0.0
        %946 = vmatprep.subr.mxu0 0.0
        %947 = vmatpush1.xpose.msra.mxu0 0.0
        %948 = vmatprep.subr.mxu0 0.0
        %949 = vmatpush1.xpose.msra.mxu0 0.0
        %950 = vmatprep.subr.mxu0 0.0
        %951 = vmatpush1.xpose.msra.mxu0 0.0
        %952 = vmatprep.subr.mxu0 0.0
        %953 = vmatpush1.xpose.msra.mxu0 0.0
        %954 = vmatprep.subr.mxu0 0.0
        %955 = vmatpush1.xpose.msra.mxu0 0.0
        %956 = vmatprep.subr.mxu0 0.0
        %957 = vmatpush1.xpose.msra.mxu0 0.0
        %958 = vmatprep.subr.mxu0 0.0
        %959 = vmatpush1.xpose.msra.mxu0 0.0
        %960 = vmatprep.subr.mxu0 0.0
        %961 = vmatpush1.xpose.msra.mxu0 0.0
        %962 = vmatprep.subr.mxu0 0.0
        %963 = vmatpush1.xpose.msra.mxu0 0.0
        %964 = vmatprep.subr.mxu0 0.0
        %965 = vmatpush1.xpose.msra.mxu0 0.0
        %966 = vmatprep.subr.mxu0 0.0
        %967 = vmatpush1.xpose.msra.mxu0 0.0
        %968 = vmatprep.subr.mxu0 0.0
        %969 = vmatpush1.xpose.msra.mxu0 0.0
        %970 = vmatprep.subr.mxu0 0.0
        %971 = vmatpush1.xpose.msra.mxu0 0.0
        %972 = vmatprep.subr.mxu0 0.0
        %973 = vmatpush1.xpose.msra.mxu0 0.0
        %974 = vmatprep.subr.mxu0 0.0
        %975 = vmatpush1.xpose.msra.mxu0 0.0
        %976 = vmatprep.mubr.f32.mxu0 0.0
        %977 = vmatmul.mubr.f32.gmra.mrb[0].mxu0 %v901
        %v978 = vpop.f32.mrb[0].mxu0
        %v979 = vadd.f32 0.0, %v978
        %v980 = vpop.f32.mrb[0].mxu0
        %981 = vmatprep.mubr.f32.mxu0 0.0
        %982 = vmatmul.mubr.f32.gmra.mrb[0].mxu0 %v904
        %v983 = vpop.f32.mrb[0].mxu0
        %v984 = vadd.f32 0.0, %v983
        %v985 = vpop.f32.mrb[0].mxu0
        %986 = vdwg.mxu0
        %v988 = vsel %vm782, %v878, 0
        %v991 = vsel %vm782, %v879, 0
        %v994 = vsel %vm782, %v886, 0
        %v997 = vsel %vm782, %v887, 0
        %999 = vmatprep.subr.mxu0 0.0
        %1000 = vmatpush1.xpose.msra.mxu0 %v994
        %1001 = vmatprep.subr.mxu0 0.0
        %1002 = vmatpush1.xpose.msra.mxu0 %v997
        %1003 = vmatprep.subr.mxu0 0.0
        %1004 = vmatpush1.xpose.msra.mxu0 0.0
        %1005 = vmatprep.subr.mxu0 0.0
        %1006 = vmatpush1.xpose.msra.mxu0 0.0
        %1007 = vmatprep.subr.mxu0 0.0
        %1008 = vmatpush1.xpose.msra.mxu0 0.0
        %1009 = vmatprep.subr.mxu0 0.0
        %1010 = vmatpush1.xpose.msra.mxu0 0.0
        %1011 = vmatprep.subr.mxu0 0.0
        %1012 = vmatpush1.xpose.msra.mxu0 0.0
        %1013 = vmatprep.subr.mxu0 0.0
        %1014 = vmatpush1.xpose.msra.mxu0 0.0
        %1015 = vmatprep.subr.mxu0 0.0
        %1016 = vmatpush1.xpose.msra.mxu0 0.0
        %1017 = vmatprep.subr.mxu0 0.0
        %1018 = vmatpush1.xpose.msra.mxu0 0.0
        %1019 = vmatprep.subr.mxu0 0.0
        %1020 = vmatpush1.xpose.msra.mxu0 0.0
        %1021 = vmatprep.subr.mxu0 0.0
        %1022 = vmatpush1.xpose.msra.mxu0 0.0
        %1023 = vmatprep.subr.mxu0 0.0
        %1024 = vmatpush1.xpose.msra.mxu0 0.0
        %1025 = vmatprep.subr.mxu0 0.0
        %1026 = vmatpush1.xpose.msra.mxu0 0.0
        %1027 = vmatprep.subr.mxu0 0.0
        %1028 = vmatpush1.xpose.msra.mxu0 0.0
        %1029 = vmatprep.subr.mxu0 0.0
        %1030 = vmatpush1.xpose.msra.mxu0 0.0
        %1031 = vmatprep.subr.mxu0 0.0
        %1032 = vmatpush1.xpose.msra.mxu0 0.0
        %1033 = vmatprep.subr.mxu0 0.0
        %1034 = vmatpush1.xpose.msra.mxu0 0.0
        %1035 = vmatprep.subr.mxu0 0.0
        %1036 = vmatpush1.xpose.msra.mxu0 0.0
        %1037 = vmatprep.subr.mxu0 0.0
        %1038 = vmatpush1.xpose.msra.mxu0 0.0
        %1039 = vmatprep.subr.mxu0 0.0
        %1040 = vmatpush1.xpose.msra.mxu0 0.0
        %1041 = vmatprep.subr.mxu0 0.0
        %1042 = vmatpush1.xpose.msra.mxu0 0.0
        %1043 = vmatprep.subr.mxu0 0.0
        %1044 = vmatpush1.xpose.msra.mxu0 0.0
        %1045 = vmatprep.subr.mxu0 0.0
        %1046 = vmatpush1.xpose.msra.mxu0 0.0
        %1047 = vmatprep.subr.mxu0 0.0
        %1048 = vmatpush1.xpose.msra.mxu0 0.0
        %1049 = vmatprep.subr.mxu0 0.0
        %1050 = vmatpush1.xpose.msra.mxu0 0.0
        %1051 = vmatprep.subr.mxu0 0.0
        %1052 = vmatpush1.xpose.msra.mxu0 0.0
        %1053 = vmatprep.subr.mxu0 0.0
        %1054 = vmatpush1.xpose.msra.mxu0 0.0
        %1055 = vmatprep.subr.mxu0 0.0
        %1056 = vmatpush1.xpose.msra.mxu0 0.0
        %1057 = vmatprep.subr.mxu0 0.0
        %1058 = vmatpush1.xpose.msra.mxu0 0.0
        %1059 = vmatprep.subr.mxu0 0.0
        %1060 = vmatpush1.xpose.msra.mxu0 0.0
        %1061 = vmatprep.subr.mxu0 0.0
        %1062 = vmatpush1.xpose.msra.mxu0 0.0
        %1063 = vmatprep.mubr.f32.mxu0 0.0
        %1064 = vmatmul.mubr.f32.gmra.mrb[0].mxu0 %v988
        %v1065 = vpop.f32.mrb[0].mxu0
        %v1066 = vadd.f32 0.0, %v1065
        %v1067 = vpop.f32.mrb[0].mxu0
        %1068 = vmatprep.mubr.f32.mxu0 0.0
        %1069 = vmatmul.mubr.f32.gmra.mrb[0].mxu0 %v991
        %v1070 = vpop.f32.mrb[0].mxu0
        %v1071 = vadd.f32 0.0, %v1070
        %v1072 = vpop.f32.mrb[0].mxu0
        %1073 = vdwg.mxu0
        %v1075 = vsel %vm782, %v880, 0
        %v1078 = vsel %vm782, %v881, 0
        %v1081 = vsel %vm782, %v888, 0
        %v1084 = vsel %vm782, %v889, 0
        %1086 = vmatprep.subr.mxu0 0.0
        %1087 = vmatpush1.xpose.msra.mxu0 %v1081
        %1088 = vmatprep.subr.mxu0 0.0
        %1089 = vmatpush1.xpose.msra.mxu0 %v1084
        %1090 = vmatprep.subr.mxu0 0.0
        %1091 = vmatpush1.xpose.msra.mxu0 0.0
        %1092 = vmatprep.subr.mxu0 0.0
        %1093 = vmatpush1.xpose.msra.mxu0 0.0
        %1094 = vmatprep.subr.mxu0 0.0
        %1095 = vmatpush1.xpose.msra.mxu0 0.0
        %1096 = vmatprep.subr.mxu0 0.0
        %1097 = vmatpush1.xpose.msra.mxu0 0.0
        %1098 = vmatprep.subr.mxu0 0.0
        %1099 = vmatpush1.xpose.msra.mxu0 0.0
        %1100 = vmatprep.subr.mxu0 0.0
        %1101 = vmatpush1.xpose.msra.mxu0 0.0
        %1102 = vmatprep.subr.mxu0 0.0
        %1103 = vmatpush1.xpose.msra.mxu0 0.0
        %1104 = vmatprep.subr.mxu0 0.0
        %1105 = vmatpush1.xpose.msra.mxu0 0.0
        %1106 = vmatprep.subr.mxu0 0.0
        %1107 = vmatpush1.xpose.msra.mxu0 0.0
        %1108 = vmatprep.subr.mxu0 0.0
        %1109 = vmatpush1.xpose.msra.mxu0 0.0
        %1110 = vmatprep.subr.mxu0 0.0
        %1111 = vmatpush1.xpose.msra.mxu0 0.0
        %1112 = vmatprep.subr.mxu0 0.0
        %1113 = vmatpush1.xpose.msra.mxu0 0.0
        %1114 = vmatprep.subr.mxu0 0.0
        %1115 = vmatpush1.xpose.msra.mxu0 0.0
        %1116 = vmatprep.subr.mxu0 0.0
        %1117 = vmatpush1.xpose.msra.mxu0 0.0
        %1118 = vmatprep.subr.mxu0 0.0
        %1119 = vmatpush1.xpose.msra.mxu0 0.0
        %1120 = vmatprep.subr.mxu0 0.0
        %1121 = vmatpush1.xpose.msra.mxu0 0.0
        %1122 = vmatprep.subr.mxu0 0.0
        %1123 = vmatpush1.xpose.msra.mxu0 0.0
        %1124 = vmatprep.subr.mxu0 0.0
        %1125 = vmatpush1.xpose.msra.mxu0 0.0
        %1126 = vmatprep.subr.mxu0 0.0
        %1127 = vmatpush1.xpose.msra.mxu0 0.0
        %1128 = vmatprep.subr.mxu0 0.0
        %1129 = vmatpush1.xpose.msra.mxu0 0.0
        %1130 = vmatprep.subr.mxu0 0.0
        %1131 = vmatpush1.xpose.msra.mxu0 0.0
        %1132 = vmatprep.subr.mxu0 0.0
        %1133 = vmatpush1.xpose.msra.mxu0 0.0
        %1134 = vmatprep.subr.mxu0 0.0
        %1135 = vmatpush1.xpose.msra.mxu0 0.0
        %1136 = vmatprep.subr.mxu0 0.0
        %1137 = vmatpush1.xpose.msra.mxu0 0.0
        %1138 = vmatprep.subr.mxu0 0.0
        %1139 = vmatpush1.xpose.msra.mxu0 0.0
        %1140 = vmatprep.subr.mxu0 0.0
        %1141 = vmatpush1.xpose.msra.mxu0 0.0
        %1142 = vmatprep.subr.mxu0 0.0
        %1143 = vmatpush1.xpose.msra.mxu0 0.0
        %1144 = vmatprep.subr.mxu0 0.0
        %1145 = vmatpush1.xpose.msra.mxu0 0.0
        %1146 = vmatprep.subr.mxu0 0.0
        %1147 = vmatpush1.xpose.msra.mxu0 0.0
        %1148 = vmatprep.subr.mxu0 0.0
        %1149 = vmatpush1.xpose.msra.mxu0 0.0
        %1150 = vmatprep.mubr.f32.mxu0 0.0
        %1151 = vmatmul.mubr.f32.gmra.mrb[0].mxu0 %v1075
        %v1152 = vpop.f32.mrb[0].mxu0
        %v1153 = vadd.f32 0.0, %v1152
        %v1154 = vpop.f32.mrb[0].mxu0
        %1155 = vmatprep.mubr.f32.mxu0 0.0
        %1156 = vmatmul.mubr.f32.gmra.mrb[0].mxu0 %v1078
        %v1157 = vpop.f32.mrb[0].mxu0
        %v1158 = vadd.f32 0.0, %v1157
        %v1159 = vpop.f32.mrb[0].mxu0
        %1160 = vdwg.mxu0
        %v1162 = vsel %vm782, %v882, 0
        %v1165 = vsel %vm782, %v883, 0
        %v1168 = vsel %vm782, %v890, 0
        %v1171 = vsel %vm782, %v891, 0
        %1173 = vmatprep.subr.mxu0 0.0
        %1174 = vmatpush1.xpose.msra.mxu0 %v1168
        %1175 = vmatprep.subr.mxu0 0.0
        %1176 = vmatpush1.xpose.msra.mxu0 %v1171
        %1177 = vmatprep.subr.mxu0 0.0
        %1178 = vmatpush1.xpose.msra.mxu0 0.0
        %1179 = vmatprep.subr.mxu0 0.0
        %1180 = vmatpush1.xpose.msra.mxu0 0.0
        %1181 = vmatprep.subr.mxu0 0.0
        %1182 = vmatpush1.xpose.msra.mxu0 0.0
        %1183 = vmatprep.subr.mxu0 0.0
        %1184 = vmatpush1.xpose.msra.mxu0 0.0
        %1185 = vmatprep.subr.mxu0 0.0
        %1186 = vmatpush1.xpose.msra.mxu0 0.0
        %1187 = vmatprep.subr.mxu0 0.0
        %1188 = vmatpush1.xpose.msra.mxu0 0.0
        %1189 = vmatprep.subr.mxu0 0.0
        %1190 = vmatpush1.xpose.msra.mxu0 0.0
        %1191 = vmatprep.subr.mxu0 0.0
        %1192 = vmatpush1.xpose.msra.mxu0 0.0
        %1193 = vmatprep.subr.mxu0 0.0
        %1194 = vmatpush1.xpose.msra.mxu0 0.0
        %1195 = vmatprep.subr.mxu0 0.0
        %1196 = vmatpush1.xpose.msra.mxu0 0.0
        %1197 = vmatprep.subr.mxu0 0.0
        %1198 = vmatpush1.xpose.msra.mxu0 0.0
        %1199 = vmatprep.subr.mxu0 0.0
        %1200 = vmatpush1.xpose.msra.mxu0 0.0
        %1201 = vmatprep.subr.mxu0 0.0
        %1202 = vmatpush1.xpose.msra.mxu0 0.0
        %1203 = vmatprep.subr.mxu0 0.0
        %1204 = vmatpush1.xpose.msra.mxu0 0.0
        %1205 = vmatprep.subr.mxu0 0.0
        %1206 = vmatpush1.xpose.msra.mxu0 0.0
        %1207 = vmatprep.subr.mxu0 0.0
        %1208 = vmatpush1.xpose.msra.mxu0 0.0
        %1209 = vmatprep.subr.mxu0 0.0
        %1210 = vmatpush1.xpose.msra.mxu0 0.0
        %1211 = vmatprep.subr.mxu0 0.0
        %1212 = vmatpush1.xpose.msra.mxu0 0.0
        %1213 = vmatprep.subr.mxu0 0.0
        %1214 = vmatpush1.xpose.msra.mxu0 0.0
        %1215 = vmatprep.subr.mxu0 0.0
        %1216 = vmatpush1.xpose.msra.mxu0 0.0
        %1217 = vmatprep.subr.mxu0 0.0
        %1218 = vmatpush1.xpose.msra.mxu0 0.0
        %1219 = vmatprep.subr.mxu0 0.0
        %1220 = vmatpush1.xpose.msra.mxu0 0.0
        %1221 = vmatprep.subr.mxu0 0.0
        %1222 = vmatpush1.xpose.msra.mxu0 0.0
        %1223 = vmatprep.subr.mxu0 0.0
        %1224 = vmatpush1.xpose.msra.mxu0 0.0
        %1225 = vmatprep.subr.mxu0 0.0
        %1226 = vmatpush1.xpose.msra.mxu0 0.0
        %1227 = vmatprep.subr.mxu0 0.0
        %1228 = vmatpush1.xpose.msra.mxu0 0.0
        %1229 = vmatprep.subr.mxu0 0.0
        %1230 = vmatpush1.xpose.msra.mxu0 0.0
        %1231 = vmatprep.subr.mxu0 0.0
        %1232 = vmatpush1.xpose.msra.mxu0 0.0
        %1233 = vmatprep.subr.mxu0 0.0
        %1234 = vmatpush1.xpose.msra.mxu0 0.0
        %1235 = vmatprep.subr.mxu0 0.0
        %1236 = vmatpush1.xpose.msra.mxu0 0.0
        %1237 = vmatprep.mubr.f32.mxu0 0.0
        %1238 = vmatmul.mubr.f32.gmra.mrb[0].mxu0 %v1162
        %v1239 = vpop.f32.mrb[0].mxu0
        %v1240 = vadd.f32 0.0, %v1239
        %v1241 = vpop.f32.mrb[0].mxu0
        %1242 = vmatprep.mubr.f32.mxu0 0.0
        %1243 = vmatmul.mubr.f32.gmra.mrb[0].mxu0 %v1165
        %v1244 = vpop.f32.mrb[0].mxu0
        %v1245 = vadd.f32 0.0, %v1244
        %v1246 = vpop.f32.mrb[0].mxu0
        %1247 = vdwg.mxu0
        %vm1248 = vcmask 130048
        %v1249 = vsel %vm1248, %v979, -inf
        %1250 = vmax.xlane.f32.xlu0 %v1249
        %v1251 = vpop.xlane.xlu0 %1250
        %v1252 = vsel %vm1248, %v984, -inf
        %1253 = vmax.xlane.f32.xlu0 %v1252
        %v1254 = vpop.xlane.xlu0 %1253
        %v1255 = vsel %vm1248, %v1066, -inf
        %1256 = vmax.xlane.f32.xlu0 %v1255
        %v1257 = vpop.xlane.xlu0 %1256
        %v1258 = vsel %vm1248, %v1071, -inf
        %1259 = vmax.xlane.f32.xlu0 %v1258
        %v1260 = vpop.xlane.xlu0 %1259
        %v1261 = vsel %vm1248, %v1153, -inf
        %1262 = vmax.xlane.f32.xlu0 %v1261
        %v1263 = vpop.xlane.xlu0 %1262
        %v1264 = vsel %vm1248, %v1158, -inf
        %1265 = vmax.xlane.f32.xlu0 %v1264
        %v1266 = vpop.xlane.xlu0 %1265
        %v1267 = vsel %vm1248, %v1240, -inf
        %1268 = vmax.xlane.f32.xlu0 %v1267
        %v1269 = vpop.xlane.xlu0 %1268
        %v1270 = vsel %vm1248, %v1245, -inf
        %1271 = vmax.xlane.f32.xlu0 %v1270
        %v1272 = vpop.xlane.xlu0 %1271
        %v1273 = vsub.f32 %v979, %v1251
        %v1274 = vsub.f32 %v984, %v1254
        %v1275 = vsub.f32 %v1066, %v1257
        %v1276 = vsub.f32 %v1071, %v1260
        %v1277 = vsub.f32 %v1153, %v1263
        %v1278 = vsub.f32 %v1158, %v1266
        %v1279 = vsub.f32 %v1240, %v1269
        %v1280 = vsub.f32 %v1245, %v1272
        %v1281 = vmul.f32 %v1273, 1.442695
        %v1282 = vpow.pop %v1281
        %v1283 = vmul.f32 %v1274, 1.442695
        %v1284 = vpow.pop %v1283
        %v1285 = vmul.f32 %v1275, 1.442695
        %v1286 = vpow.pop %v1285
        %v1287 = vmul.f32 %v1276, 1.442695
        %v1288 = vpow.pop %v1287
        %v1289 = vmul.f32 %v1277, 1.442695
        %v1290 = vpow.pop %v1289
        %v1291 = vmul.f32 %v1278, 1.442695
        %v1292 = vpow.pop %v1291
        %v1293 = vmul.f32 %v1279, 1.442695
        %v1294 = vpow.pop %v1293
        %v1295 = vmul.f32 %v1280, 1.442695
        %v1296 = vpow.pop %v1295
        %v1297 = vsel %vm1248, %v1282, 0.0
        %1298 = vadd.xlane.f32.xlu0 %v1297
        %v1299 = vpop.xlane.xlu0 %1298
        %v1300 = vsel %vm1248, %v1284, 0.0
        %1301 = vadd.xlane.f32.xlu0 %v1300
        %v1302 = vpop.xlane.xlu0 %1301
        %v1303 = vsel %vm1248, %v1286, 0.0
        %1304 = vadd.xlane.f32.xlu0 %v1303
        %v1305 = vpop.xlane.xlu0 %1304
        %v1306 = vsel %vm1248, %v1288, 0.0
        %1307 = vadd.xlane.f32.xlu0 %v1306
        %v1308 = vpop.xlane.xlu0 %1307
        %v1309 = vsel %vm1248, %v1290, 0.0
        %1310 = vadd.xlane.f32.xlu0 %v1309
        %v1311 = vpop.xlane.xlu0 %1310
        %v1312 = vsel %vm1248, %v1292, 0.0
        %1313 = vadd.xlane.f32.xlu0 %v1312
        %v1314 = vpop.xlane.xlu0 %1313
        %v1315 = vsel %vm1248, %v1294, 0.0
        %1316 = vadd.xlane.f32.xlu0 %v1315
        %v1317 = vpop.xlane.xlu0 %1316
        %v1318 = vsel %vm1248, %v1296, 0.0
        %1319 = vadd.xlane.f32.xlu0 %v1318
        %v1320 = vpop.xlane.xlu0 %1319
        %v1321 = vrcp.pop %v1299
        %v1322 = vrcp.pop %v1302
        %v1323 = vrcp.pop %v1305
        %v1324 = vrcp.pop %v1308
        %v1325 = vrcp.pop %v1311
        %v1326 = vrcp.pop %v1314
        %v1327 = vrcp.pop %v1317
        %v1328 = vrcp.pop %v1320
        %v1329 = vmul.f32 %v1282, %v1321
        %v1330 = vmul.f32 %v1284, %v1322
        %v1331 = vmul.f32 %v1286, %v1323
        %v1332 = vmul.f32 %v1288, %v1324
        %v1333 = vmul.f32 %v1290, %v1325
        %v1334 = vmul.f32 %v1292, %v1326
        %v1335 = vmul.f32 %v1294, %v1327
        %v1336 = vmul.f32 %v1296, %v1328
        %v1338 = vsel %vm1248, %v1329, 0
        %v1341 = vsel %vm1248, %v1330, 0
        %1343 = vmatprep.subr.mxu0 0.0
        %1344 = vmatpush1.msra.mxu0 %v892
        %1345 = vmatprep.subr.mxu0 0.0
        %1346 = vmatpush1.msra.mxu0 %v893
        %1347 = vmatprep.subr.mxu0 0.0
        %1348 = vmatpush1.msra.mxu0 0.0
        %1349 = vmatprep.subr.mxu0 0.0
        %1350 = vmatpush1.msra.mxu0 0.0
        %1351 = vmatprep.subr.mxu0 0.0
        %1352 = vmatpush1.msra.mxu0 0.0
        %1353 = vmatprep.subr.mxu0 0.0
        %1354 = vmatpush1.msra.mxu0 0.0
        %1355 = vmatprep.subr.mxu0 0.0
        %1356 = vmatpush1.msra.mxu0 0.0
        %1357 = vmatprep.subr.mxu0 0.0
        %1358 = vmatpush1.msra.mxu0 0.0
        %1359 = vmatprep.subr.mxu0 0.0
        %1360 = vmatpush1.msra.mxu0 0.0
        %1361 = vmatprep.subr.mxu0 0.0
        %1362 = vmatpush1.msra.mxu0 0.0
        %1363 = vmatprep.subr.mxu0 0.0
        %1364 = vmatpush1.msra.mxu0 0.0
        %1365 = vmatprep.subr.mxu0 0.0
        %1366 = vmatpush1.msra.mxu0 0.0
        %1367 = vmatprep.subr.mxu0 0.0
        %1368 = vmatpush1.msra.mxu0 0.0
        %1369 = vmatprep.subr.mxu0 0.0
        %1370 = vmatpush1.msra.mxu0 0.0
        %1371 = vmatprep.subr.mxu0 0.0
        %1372 = vmatpush1.msra.mxu0 0.0
        %1373 = vmatprep.subr.mxu0 0.0
        %1374 = vmatpush1.msra.mxu0 0.0
        %1375 = vmatprep.subr.mxu0 0.0
        %1376 = vmatpush1.msra.mxu0 0.0
        %1377 = vmatprep.subr.mxu0 0.0
        %1378 = vmatpush1.msra.mxu0 0.0
        %1379 = vmatprep.subr.mxu0 0.0
        %1380 = vmatpush1.msra.mxu0 0.0
        %1381 = vmatprep.subr.mxu0 0.0
        %1382 = vmatpush1.msra.mxu0 0.0
        %1383 = vmatprep.subr.mxu0 0.0
        %1384 = vmatpush1.msra.mxu0 0.0
        %1385 = vmatprep.subr.mxu0 0.0
        %1386 = vmatpush1.msra.mxu0 0.0
        %1387 = vmatprep.subr.mxu0 0.0
        %1388 = vmatpush1.msra.mxu0 0.0
        %1389 = vmatprep.subr.mxu0 0.0
        %1390 = vmatpush1.msra.mxu0 0.0
        %1391 = vmatprep.subr.mxu0 0.0
        %1392 = vmatpush1.msra.mxu0 0.0
        %1393 = vmatprep.subr.mxu0 0.0
        %1394 = vmatpush1.msra.mxu0 0.0
        %1395 = vmatprep.subr.mxu0 0.0
        %1396 = vmatpush1.msra.mxu0 0.0
        %1397 = vmatprep.subr.mxu0 0.0
        %1398 = vmatpush1.msra.mxu0 0.0
        %1399 = vmatprep.subr.mxu0 0.0
        %1400 = vmatpush1.msra.mxu0 0.0
        %1401 = vmatprep.subr.mxu0 0.0
        %1402 = vmatpush1.msra.mxu0 0.0
        %1403 = vmatprep.subr.mxu0 0.0
        %1404 = vmatpush1.msra.mxu0 0.0
        %1405 = vmatprep.subr.mxu0 0.0
        %1406 = vmatpush1.msra.mxu0 0.0
        %1407 = vmatprep.mubr.f32.mxu0 0.0
        %1408 = vmatmul.mubr.f32.gmra.mrb[0].mxu0 %v1338
        %v1409 = vpop.f32.mrb[0].mxu0
        %v1410 = vadd.f32 0.0, %v1409
        %v1411 = vpop.f32.mrb[0].mxu0
        %1412 = vmatprep.mubr.f32.mxu0 0.0
        %1413 = vmatmul.mubr.f32.gmra.mrb[0].mxu0 %v1341
        %v1414 = vpop.f32.mrb[0].mxu0
        %v1415 = vadd.f32 0.0, %v1414
        %v1416 = vpop.f32.mrb[0].mxu0
        %1417 = vdwg.mxu0
        %v1419 = vsel %vm1248, %v1331, 0
        %v1422 = vsel %vm1248, %v1332, 0
        %1424 = vmatprep.subr.mxu0 0.0
        %1425 = vmatpush1.msra.mxu0 %v894
        %1426 = vmatprep.subr.mxu0 0.0
        %1427 = vmatpush1.msra.mxu0 %v895
        %1428 = vmatprep.subr.mxu0 0.0
        %1429 = vmatpush1.msra.mxu0 0.0
        %1430 = vmatprep.subr.mxu0 0.0
        %1431 = vmatpush1.msra.mxu0 0.0
        %1432 = vmatprep.subr.mxu0 0.0
        %1433 = vmatpush1.msra.mxu0 0.0
        %1434 = vmatprep.subr.mxu0 0.0
        %1435 = vmatpush1.msra.mxu0 0.0
        %1436 = vmatprep.subr.mxu0 0.0
        %1437 = vmatpush1.msra.mxu0 0.0
        %1438 = vmatprep.subr.mxu0 0.0
        %1439 = vmatpush1.msra.mxu0 0.0
        %1440 = vmatprep.subr.mxu0 0.0
        %1441 = vmatpush1.msra.mxu0 0.0
        %1442 = vmatprep.subr.mxu0 0.0
        %1443 = vmatpush1.msra.mxu0 0.0
        %1444 = vmatprep.subr.mxu0 0.0
        %1445 = vmatpush1.msra.mxu0 0.0
        %1446 = vmatprep.subr.mxu0 0.0
        %1447 = vmatpush1.msra.mxu0 0.0
        %1448 = vmatprep.subr.mxu0 0.0
        %1449 = vmatpush1.msra.mxu0 0.0
        %1450 = vmatprep.subr.mxu0 0.0
        %1451 = vmatpush1.msra.mxu0 0.0
        %1452 = vmatprep.subr.mxu0 0.0
        %1453 = vmatpush1.msra.mxu0 0.0
        %1454 = vmatprep.subr.mxu0 0.0
        %1455 = vmatpush1.msra.mxu0 0.0
        %1456 = vmatprep.subr.mxu0 0.0
        %1457 = vmatpush1.msra.mxu0 0.0
        %1458 = vmatprep.subr.mxu0 0.0
        %1459 = vmatpush1.msra.mxu0 0.0
        %1460 = vmatprep.subr.mxu0 0.0
        %1461 = vmatpush1.msra.mxu0 0.0
        %1462 = vmatprep.subr.mxu0 0.0
        %1463 = vmatpush1.msra.mxu0 0.0
        %1464 = vmatprep.subr.mxu0 0.0
        %1465 = vmatpush1.msra.mxu0 0.0
        %1466 = vmatprep.subr.mxu0 0.0
        %1467 = vmatpush1.msra.mxu0 0.0
        %1468 = vmatprep.subr.mxu0 0.0
        %1469 = vmatpush1.msra.mxu0 0.0
        %1470 = vmatprep.subr.mxu0 0.0
        %1471 = vmatpush1.msra.mxu0 0.0
        %1472 = vmatprep.subr.mxu0 0.0
        %1473 = vmatpush1.msra.mxu0 0.0
        %1474 = vmatprep.subr.mxu0 0.0
        %1475 = vmatpush1.msra.mxu0 0.0
        %1476 = vmatprep.subr.mxu0 0.0
        %1477 = vmatpush1.msra.mxu0 0.0
        %1478 = vmatprep.subr.mxu0 0.0
        %1479 = vmatpush1.msra.mxu0 0.0
        %1480 = vmatprep.subr.mxu0 0.0
        %1481 = vmatpush1.msra.mxu0 0.0
        %1482 = vmatprep.subr.mxu0 0.0
        %1483 = vmatpush1.msra.mxu0 0.0
        %1484 = vmatprep.subr.mxu0 0.0
        %1485 = vmatpush1.msra.mxu0 0.0
        %1486 = vmatprep.subr.mxu0 0.0
        %1487 = vmatpush1.msra.mxu0 0.0
        %1488 = vmatprep.mubr.f32.mxu0 0.0
        %1489 = vmatmul.mubr.f32.gmra.mrb[0].mxu0 %v1419
        %v1490 = vpop.f32.mrb[0].mxu0
        %v1491 = vadd.f32 0.0, %v1490
        %v1492 = vpop.f32.mrb[0].mxu0
        %1493 = vmatprep.mubr.f32.mxu0 0.0
        %1494 = vmatmul.mubr.f32.gmra.mrb[0].mxu0 %v1422
        %v1495 = vpop.f32.mrb[0].mxu0
        %v1496 = vadd.f32 0.0, %v1495
        %v1497 = vpop.f32.mrb[0].mxu0
        %1498 = vdwg.mxu0
        %v1500 = vsel %vm1248, %v1333, 0
        %v1503 = vsel %vm1248, %v1334, 0
        %1505 = vmatprep.subr.mxu0 0.0
        %1506 = vmatpush1.msra.mxu0 %v896
        %1507 = vmatprep.subr.mxu0 0.0
        %1508 = vmatpush1.msra.mxu0 %v897
        %1509 = vmatprep.subr.mxu0 0.0
        %1510 = vmatpush1.msra.mxu0 0.0
        %1511 = vmatprep.subr.mxu0 0.0
        %1512 = vmatpush1.msra.mxu0 0.0
        %1513 = vmatprep.subr.mxu0 0.0
        %1514 = vmatpush1.msra.mxu0 0.0
        %1515 = vmatprep.subr.mxu0 0.0
        %1516 = vmatpush1.msra.mxu0 0.0
        %1517 = vmatprep.subr.mxu0 0.0
        %1518 = vmatpush1.msra.mxu0 0.0
        %1519 = vmatprep.subr.mxu0 0.0
        %1520 = vmatpush1.msra.mxu0 0.0
        %1521 = vmatprep.subr.mxu0 0.0
        %1522 = vmatpush1.msra.mxu0 0.0
        %1523 = vmatprep.subr.mxu0 0.0
        %1524 = vmatpush1.msra.mxu0 0.0
        %1525 = vmatprep.subr.mxu0 0.0
        %1526 = vmatpush1.msra.mxu0 0.0
        %1527 = vmatprep.subr.mxu0 0.0
        %1528 = vmatpush1.msra.mxu0 0.0
        %1529 = vmatprep.subr.mxu0 0.0
        %1530 = vmatpush1.msra.mxu0 0.0
        %1531 = vmatprep.subr.mxu0 0.0
        %1532 = vmatpush1.msra.mxu0 0.0
        %1533 = vmatprep.subr.mxu0 0.0
        %1534 = vmatpush1.msra.mxu0 0.0
        %1535 = vmatprep.subr.mxu0 0.0
        %1536 = vmatpush1.msra.mxu0 0.0
        %1537 = vmatprep.subr.mxu0 0.0
        %1538 = vmatpush1.msra.mxu0 0.0
        %1539 = vmatprep.subr.mxu0 0.0
        %1540 = vmatpush1.msra.mxu0 0.0
        %1541 = vmatprep.subr.mxu0 0.0
        %1542 = vmatpush1.msra.mxu0 0.0
        %1543 = vmatprep.subr.mxu0 0.0
        %1544 = vmatpush1.msra.mxu0 0.0
        %1545 = vmatprep.subr.mxu0 0.0
        %1546 = vmatpush1.msra.mxu0 0.0
        %1547 = vmatprep.subr.mxu0 0.0
        %1548 = vmatpush1.msra.mxu0 0.0
        %1549 = vmatprep.subr.mxu0 0.0
        %1550 = vmatpush1.msra.mxu0 0.0
        %1551 = vmatprep.subr.mxu0 0.0
        %1552 = vmatpush1.msra.mxu0 0.0
        %1553 = vmatprep.subr.mxu0 0.0
        %1554 = vmatpush1.msra.mxu0 0.0
        %1555 = vmatprep.subr.mxu0 0.0
        %1556 = vmatpush1.msra.mxu0 0.0
        %1557 = vmatprep.subr.mxu0 0.0
        %1558 = vmatpush1.msra.mxu0 0.0
        %1559 = vmatprep.subr.mxu0 0.0
        %1560 = vmatpush1.msra.mxu0 0.0
        %1561 = vmatprep.subr.mxu0 0.0
        %1562 = vmatpush1.msra.mxu0 0.0
        %1563 = vmatprep.subr.mxu0 0.0
        %1564 = vmatpush1.msra.mxu0 0.0
        %1565 = vmatprep.subr.mxu0 0.0
        %1566 = vmatpush1.msra.mxu0 0.0
        %1567 = vmatprep.subr.mxu0 0.0
        %1568 = vmatpush1.msra.mxu0 0.0
        %1569 = vmatprep.mubr.f32.mxu0 0.0
        %1570 = vmatmul.mubr.f32.gmra.mrb[0].mxu0 %v1500
        %v1571 = vpop.f32.mrb[0].mxu0
        %v1572 = vadd.f32 0.0, %v1571
        %v1573 = vpop.f32.mrb[0].mxu0
        %1574 = vmatprep.mubr.f32.mxu0 0.0
        %1575 = vmatmul.mubr.f32.gmra.mrb[0].mxu0 %v1503
        %v1576 = vpop.f32.mrb[0].mxu0
        %v1577 = vadd.f32 0.0, %v1576
        %v1578 = vpop.f32.mrb[0].mxu0
        %1579 = vdwg.mxu0
        %v1581 = vsel %vm1248, %v1335, 0
        %v1584 = vsel %vm1248, %v1336, 0
        %1586 = vmatprep.subr.mxu0 0.0
        %1587 = vmatpush1.msra.mxu0 %v898
        %1588 = vmatprep.subr.mxu0 0.0
        %1589 = vmatpush1.msra.mxu0 %v899
        %1590 = vmatprep.subr.mxu0 0.0
        %1591 = vmatpush1.msra.mxu0 0.0
        %1592 = vmatprep.subr.mxu0 0.0
        %1593 = vmatpush1.msra.mxu0 0.0
        %1594 = vmatprep.subr.mxu0 0.0
        %1595 = vmatpush1.msra.mxu0 0.0
        %1596 = vmatprep.subr.mxu0 0.0
        %1597 = vmatpush1.msra.mxu0 0.0
        %1598 = vmatprep.subr.mxu0 0.0
        %1599 = vmatpush1.msra.mxu0 0.0
        %1600 = vmatprep.subr.mxu0 0.0
        %1601 = vmatpush1.msra.mxu0 0.0
        %1602 = vmatprep.subr.mxu0 0.0
        %1603 = vmatpush1.msra.mxu0 0.0
        %1604 = vmatprep.subr.mxu0 0.0
        %1605 = vmatpush1.msra.mxu0 0.0
        %1606 = vmatprep.subr.mxu0 0.0
        %1607 = vmatpush1.msra.mxu0 0.0
        %1608 = vmatprep.subr.mxu0 0.0
        %1609 = vmatpush1.msra.mxu0 0.0
        %1610 = vmatprep.subr.mxu0 0.0
        %1611 = vmatpush1.msra.mxu0 0.0
        %1612 = vmatprep.subr.mxu0 0.0
        %1613 = vmatpush1.msra.mxu0 0.0
        %1614 = vmatprep.subr.mxu0 0.0
        %1615 = vmatpush1.msra.mxu0 0.0
        %1616 = vmatprep.subr.mxu0 0.0
        %1617 = vmatpush1.msra.mxu0 0.0
        %1618 = vmatprep.subr.mxu0 0.0
        %1619 = vmatpush1.msra.mxu0 0.0
        %1620 = vmatprep.subr.mxu0 0.0
        %1621 = vmatpush1.msra.mxu0 0.0
        %1622 = vmatprep.subr.mxu0 0.0
        %1623 = vmatpush1.msra.mxu0 0.0
        %1624 = vmatprep.subr.mxu0 0.0
        %1625 = vmatpush1.msra.mxu0 0.0
        %1626 = vmatprep.subr.mxu0 0.0
        %1627 = vmatpush1.msra.mxu0 0.0
        %1628 = vmatprep.subr.mxu0 0.0
        %1629 = vmatpush1.msra.mxu0 0.0
        %1630 = vmatprep.subr.mxu0 0.0
        %1631 = vmatpush1.msra.mxu0 0.0
        %1632 = vmatprep.subr.mxu0 0.0
        %1633 = vmatpush1.msra.mxu0 0.0
        %1634 = vmatprep.subr.mxu0 0.0
        %1635 = vmatpush1.msra.mxu0 0.0
        %1636 = vmatprep.subr.mxu0 0.0
        %1637 = vmatpush1.msra.mxu0 0.0
        %1638 = vmatprep.subr.mxu0 0.0
        %1639 = vmatpush1.msra.mxu0 0.0
        %1640 = vmatprep.subr.mxu0 0.0
        %1641 = vmatpush1.msra.mxu0 0.0
        %1642 = vmatprep.subr.mxu0 0.0
        %1643 = vmatpush1.msra.mxu0 0.0
        %1644 = vmatprep.subr.mxu0 0.0
        %1645 = vmatpush1.msra.mxu0 0.0
        %1646 = vmatprep.subr.mxu0 0.0
        %1647 = vmatpush1.msra.mxu0 0.0
        %1648 = vmatprep.subr.mxu0 0.0
        %1649 = vmatpush1.msra.mxu0 0.0
        %1650 = vmatprep.mubr.f32.mxu0 0.0
        %1651 = vmatmul.mubr.f32.gmra.mrb[0].mxu0 %v1581
        %v1652 = vpop.f32.mrb[0].mxu0
        %v1653 = vadd.f32 0.0, %v1652
        %v1654 = vpop.f32.mrb[0].mxu0
        %1655 = vmatprep.mubr.f32.mxu0 0.0
        %1656 = vmatmul.mubr.f32.gmra.mrb[0].mxu0 %v1584
        %v1657 = vpop.f32.mrb[0].mxu0
        %v1658 = vadd.f32 0.0, %v1657
        %v1659 = vpop.f32.mrb[0].mxu0
        %1660 = vdwg.mxu0
        %v1661 = vld [vmem:[#allocation10] sm:$0xff]
        %v1662 = vld [vmem:[#allocation10 + $0x8] sm:$0xff]
        %v1663 = vld [vmem:[#allocation10 + $0x10] sm:$0xff]
        %v1664 = vld [vmem:[#allocation10 + $0x18] sm:$0xff]
        %v1665 = vld [vmem:[#allocation10 + $0x20] sm:$0xff]
        %v1666 = vld [vmem:[#allocation10 + $0x28] sm:$0xff]
        %v1667 = vld [vmem:[#allocation10 + $0x30] sm:$0xff]
        %v1668 = vld [vmem:[#allocation10 + $0x38] sm:$0xff]
        %v1669 = vld [vmem:[#allocation10 + $0x40] sm:$0xff]
        %v1670 = vld [vmem:[#allocation10 + $0x48] sm:$0xff]
        %v1671 = vld [vmem:[#allocation10 + $0x50] sm:$0xff]
        %v1672 = vld [vmem:[#allocation10 + $0x58] sm:$0xff]
        %v1673 = vld [vmem:[#allocation10 + $0x60] sm:$0xff]
        %v1674 = vld [vmem:[#allocation10 + $0x68] sm:$0xff]
        %v1675 = vld [vmem:[#allocation10 + $0x70] sm:$0xff]
        %v1676 = vld [vmem:[#allocation10 + $0x78] sm:$0xff]
        %v1678 = vsel %vm782, %v1410, 0
        %v1681 = vsel %vm782, %v1415, 0
        %1683 = vmatprep.subr.mxu0 0.0
        %1684 = vmatpush1.msra.mxu0 %v1661
        %1685 = vmatprep.subr.mxu0 0.0
        %1686 = vmatpush1.msra.mxu0 %v1662
        %1687 = vmatprep.subr.mxu0 0.0
        %1688 = vmatpush1.msra.mxu0 %v1663
        %1689 = vmatprep.subr.mxu0 0.0
        %1690 = vmatpush1.msra.mxu0 %v1664
        %1691 = vmatprep.subr.mxu0 0.0
        %1692 = vmatpush1.msra.mxu0 0.0
        %1693 = vmatprep.subr.mxu0 0.0
        %1694 = vmatpush1.msra.mxu0 0.0
        %1695 = vmatprep.subr.mxu0 0.0
        %1696 = vmatpush1.msra.mxu0 0.0
        %1697 = vmatprep.subr.mxu0 0.0
        %1698 = vmatpush1.msra.mxu0 0.0
        %1699 = vmatprep.subr.mxu0 0.0
        %1700 = vmatpush1.msra.mxu0 0.0
        %1701 = vmatprep.subr.mxu0 0.0
        %1702 = vmatpush1.msra.mxu0 0.0
        %1703 = vmatprep.subr.mxu0 0.0
        %1704 = vmatpush1.msra.mxu0 0.0
        %1705 = vmatprep.subr.mxu0 0.0
        %1706 = vmatpush1.msra.mxu0 0.0
        %1707 = vmatprep.subr.mxu0 0.0
        %1708 = vmatpush1.msra.mxu0 0.0
        %1709 = vmatprep.subr.mxu0 0.0
        %1710 = vmatpush1.msra.mxu0 0.0
        %1711 = vmatprep.subr.mxu0 0.0
        %1712 = vmatpush1.msra.mxu0 0.0
        %1713 = vmatprep.subr.mxu0 0.0
        %1714 = vmatpush1.msra.mxu0 0.0
        %1715 = vmatprep.subr.mxu0 0.0
        %1716 = vmatpush1.msra.mxu0 0.0
        %1717 = vmatprep.subr.mxu0 0.0
        %1718 = vmatpush1.msra.mxu0 0.0
        %1719 = vmatprep.subr.mxu0 0.0
        %1720 = vmatpush1.msra.mxu0 0.0
        %1721 = vmatprep.subr.mxu0 0.0
        %1722 = vmatpush1.msra.mxu0 0.0
        %1723 = vmatprep.subr.mxu0 0.0
        %1724 = vmatpush1.msra.mxu0 0.0
        %1725 = vmatprep.subr.mxu0 0.0
        %1726 = vmatpush1.msra.mxu0 0.0
        %1727 = vmatprep.subr.mxu0 0.0
        %1728 = vmatpush1.msra.mxu0 0.0
        %1729 = vmatprep.subr.mxu0 0.0
        %1730 = vmatpush1.msra.mxu0 0.0
        %1731 = vmatprep.subr.mxu0 0.0
        %1732 = vmatpush1.msra.mxu0 0.0
        %1733 = vmatprep.subr.mxu0 0.0
        %1734 = vmatpush1.msra.mxu0 0.0
        %1735 = vmatprep.subr.mxu0 0.0
        %1736 = vmatpush1.msra.mxu0 0.0
        %1737 = vmatprep.subr.mxu0 0.0
        %1738 = vmatpush1.msra.mxu0 0.0
        %1739 = vmatprep.subr.mxu0 0.0
        %1740 = vmatpush1.msra.mxu0 0.0
        %1741 = vmatprep.subr.mxu0 0.0
        %1742 = vmatpush1.msra.mxu0 0.0
        %1743 = vmatprep.subr.mxu0 0.0
        %1744 = vmatpush1.msra.mxu0 0.0
        %1745 = vmatprep.subr.mxu0 0.0
        %1746 = vmatpush1.msra.mxu0 0.0
        %1747 = vmatprep.mubr.f32.mxu0 0.0
        %1748 = vmatmul.mubr.f32.gmra.mrb[0].mxu0 %v1678
        %v1749 = vpop.f32.mrb[0].mxu0
        %v1750 = vadd.f32 0.0, %v1749
        %v1751 = vpop.f32.mrb[0].mxu0
        %1752 = vmatprep.mubr.f32.mxu0 0.0
        %1753 = vmatmul.mubr.f32.gmra.mrb[0].mxu0 %v1681
        %v1754 = vpop.f32.mrb[0].mxu0
        %v1755 = vadd.f32 0.0, %v1754
        %v1756 = vpop.f32.mrb[0].mxu0
        %1757 = vdwg.mxu0
        %v1759 = vsel %vm782, %v1491, 0
        %v1762 = vsel %vm782, %v1496, 0
        %1764 = vmatprep.subr.mxu0 0.0
        %1765 = vmatpush1.msra.mxu0 %v1665
        %1766 = vmatprep.subr.mxu0 0.0
        %1767 = vmatpush1.msra.mxu0 %v1666
        %1768 = vmatprep.subr.mxu0 0.0
        %1769 = vmatpush1.msra.mxu0 %v1667
        %1770 = vmatprep.subr.mxu0 0.0
        %1771 = vmatpush1.msra.mxu0 %v1668
        %1772 = vmatprep.subr.mxu0 0.0
        %1773 = vmatpush1.msra.mxu0 0.0
        %1774 = vmatprep.subr.mxu0 0.0
        %1775 = vmatpush1.msra.mxu0 0.0
        %1776 = vmatprep.subr.mxu0 0.0
        %1777 = vmatpush1.msra.mxu0 0.0
        %1778 = vmatprep.subr.mxu0 0.0
        %1779 = vmatpush1.msra.mxu0 0.0
        %1780 = vmatprep.subr.mxu0 0.0
        %1781 = vmatpush1.msra.mxu0 0.0
        %1782 = vmatprep.subr.mxu0 0.0
        %1783 = vmatpush1.msra.mxu0 0.0
        %1784 = vmatprep.subr.mxu0 0.0
        %1785 = vmatpush1.msra.mxu0 0.0
        %1786 = vmatprep.subr.mxu0 0.0
        %1787 = vmatpush1.msra.mxu0 0.0
        %1788 = vmatprep.subr.mxu0 0.0
        %1789 = vmatpush1.msra.mxu0 0.0
        %1790 = vmatprep.subr.mxu0 0.0
        %1791 = vmatpush1.msra.mxu0 0.0
        %1792 = vmatprep.subr.mxu0 0.0
        %1793 = vmatpush1.msra.mxu0 0.0
        %1794 = vmatprep.subr.mxu0 0.0
        %1795 = vmatpush1.msra.mxu0 0.0
        %1796 = vmatprep.subr.mxu0 0.0
        %1797 = vmatpush1.msra.mxu0 0.0
        %1798 = vmatprep.subr.mxu0 0.0
        %1799 = vmatpush1.msra.mxu0 0.0
        %1800 = vmatprep.subr.mxu0 0.0
        %1801 = vmatpush1.msra.mxu0 0.0
        %1802 = vmatprep.subr.mxu0 0.0
        %1803 = vmatpush1.msra.mxu0 0.0
        %1804 = vmatprep.subr.mxu0 0.0
        %1805 = vmatpush1.msra.mxu0 0.0
        %1806 = vmatprep.subr.mxu0 0.0
        %1807 = vmatpush1.msra.mxu0 0.0
        %1808 = vmatprep.subr.mxu0 0.0
        %1809 = vmatpush1.msra.mxu0 0.0
        %1810 = vmatprep.subr.mxu0 0.0
        %1811 = vmatpush1.msra.mxu0 0.0
        %1812 = vmatprep.subr.mxu0 0.0
        %1813 = vmatpush1.msra.mxu0 0.0
        %1814 = vmatprep.subr.mxu0 0.0
        %1815 = vmatpush1.msra.mxu0 0.0
        %1816 = vmatprep.subr.mxu0 0.0
        %1817 = vmatpush1.msra.mxu0 0.0
        %1818 = vmatprep.subr.mxu0 0.0
        %1819 = vmatpush1.msra.mxu0 0.0
        %1820 = vmatprep.subr.mxu0 0.0
        %1821 = vmatpush1.msra.mxu0 0.0
        %1822 = vmatprep.subr.mxu0 0.0
        %1823 = vmatpush1.msra.mxu0 0.0
        %1824 = vmatprep.subr.mxu0 0.0
        %1825 = vmatpush1.msra.mxu0 0.0
        %1826 = vmatprep.subr.mxu0 0.0
        %1827 = vmatpush1.msra.mxu0 0.0
        %1828 = vmatprep.mubr.f32.mxu0 0.0
        %1829 = vmatmul.mubr.f32.gmra.mrb[0].mxu0 %v1759
        %v1830 = vpop.f32.mrb[0].mxu0
        %v1831 = vadd.f32 0.0, %v1830
        %v1832 = vpop.f32.mrb[0].mxu0
        %1833 = vmatprep.mubr.f32.mxu0 0.0
        %1834 = vmatmul.mubr.f32.gmra.mrb[0].mxu0 %v1762
        %v1835 = vpop.f32.mrb[0].mxu0
        %v1836 = vadd.f32 0.0, %v1835
        %v1837 = vpop.f32.mrb[0].mxu0
        %1838 = vdwg.mxu0
        %v1840 = vsel %vm782, %v1572, 0
        %v1843 = vsel %vm782, %v1577, 0
        %1845 = vmatprep.subr.mxu0 0.0
        %1846 = vmatpush1.msra.mxu0 %v1669
        %1847 = vmatprep.subr.mxu0 0.0
        %1848 = vmatpush1.msra.mxu0 %v1670
        %1849 = vmatprep.subr.mxu0 0.0
        %1850 = vmatpush1.msra.mxu0 %v1671
        %1851 = vmatprep.subr.mxu0 0.0
        %1852 = vmatpush1.msra.mxu0 %v1672
        %1853 = vmatprep.subr.mxu0 0.0
        %1854 = vmatpush1.msra.mxu0 0.0
        %1855 = vmatprep.subr.mxu0 0.0
        %1856 = vmatpush1.msra.mxu0 0.0
        %1857 = vmatprep.subr.mxu0 0.0
        %1858 = vmatpush1.msra.mxu0 0.0
        %1859 = vmatprep.subr.mxu0 0.0
        %1860 = vmatpush1.msra.mxu0 0.0
        %1861 = vmatprep.subr.mxu0 0.0
        %1862 = vmatpush1.msra.mxu0 0.0
        %1863 = vmatprep.subr.mxu0 0.0
        %1864 = vmatpush1.msra.mxu0 0.0
        %1865 = vmatprep.subr.mxu0 0.0
        %1866 = vmatpush1.msra.mxu0 0.0
        %1867 = vmatprep.subr.mxu0 0.0
        %1868 = vmatpush1.msra.mxu0 0.0
        %1869 = vmatprep.subr.mxu0 0.0
        %1870 = vmatpush1.msra.mxu0 0.0
        %1871 = vmatprep.subr.mxu0 0.0
        %1872 = vmatpush1.msra.mxu0 0.0
        %1873 = vmatprep.subr.mxu0 0.0
        %1874 = vmatpush1.msra.mxu0 0.0
        %1875 = vmatprep.subr.mxu0 0.0
        %1876 = vmatpush1.msra.mxu0 0.0
        %1877 = vmatprep.subr.mxu0 0.0
        %1878 = vmatpush1.msra.mxu0 0.0
        %1879 = vmatprep.subr.mxu0 0.0
        %1880 = vmatpush1.msra.mxu0 0.0
        %1881 = vmatprep.subr.mxu0 0.0
        %1882 = vmatpush1.msra.mxu0 0.0
        %1883 = vmatprep.subr.mxu0 0.0
        %1884 = vmatpush1.msra.mxu0 0.0
        %1885 = vmatprep.subr.mxu0 0.0
        %1886 = vmatpush1.msra.mxu0 0.0
        %1887 = vmatprep.subr.mxu0 0.0
        %1888 = vmatpush1.msra.mxu0 0.0
        %1889 = vmatprep.subr.mxu0 0.0
        %1890 = vmatpush1.msra.mxu0 0.0
        %1891 = vmatprep.subr.mxu0 0.0
        %1892 = vmatpush1.msra.mxu0 0.0
        %1893 = vmatprep.subr.mxu0 0.0
        %1894 = vmatpush1.msra.mxu0 0.0
        %1895 = vmatprep.subr.mxu0 0.0
        %1896 = vmatpush1.msra.mxu0 0.0
        %1897 = vmatprep.subr.mxu0 0.0
        %1898 = vmatpush1.msra.mxu0 0.0
        %1899 = vmatprep.subr.mxu0 0.0
        %1900 = vmatpush1.msra.mxu0 0.0
        %1901 = vmatprep.subr.mxu0 0.0
        %1902 = vmatpush1.msra.mxu0 0.0
        %1903 = vmatprep.subr.mxu0 0.0
        %1904 = vmatpush1.msra.mxu0 0.0
        %1905 = vmatprep.subr.mxu0 0.0
        %1906 = vmatpush1.msra.mxu0 0.0
        %1907 = vmatprep.subr.mxu0 0.0
        %1908 = vmatpush1.msra.mxu0 0.0
        %1909 = vmatprep.mubr.f32.mxu0 0.0
        %1910 = vmatmul.mubr.f32.gmra.mrb[0].mxu0 %v1840
        %v1911 = vpop.f32.mrb[0].mxu0
        %v1912 = vadd.f32 0.0, %v1911
        %v1913 = vpop.f32.mrb[0].mxu0
        %1914 = vmatprep.mubr.f32.mxu0 0.0
        %1915 = vmatmul.mubr.f32.gmra.mrb[0].mxu0 %v1843
        %v1916 = vpop.f32.mrb[0].mxu0
        %v1917 = vadd.f32 0.0, %v1916
        %v1918 = vpop.f32.mrb[0].mxu0
        %1919 = vdwg.mxu0
        %v1921 = vsel %vm782, %v1653, 0
        %v1924 = vsel %vm782, %v1658, 0
        %1926 = vmatprep.subr.mxu0 0.0
        %1927 = vmatpush1.msra.mxu0 %v1673
        %1928 = vmatprep.subr.mxu0 0.0
        %1929 = vmatpush1.msra.mxu0 %v1674
        %1930 = vmatprep.subr.mxu0 0.0
        %1931 = vmatpush1.msra.mxu0 %v1675
        %1932 = vmatprep.subr.mxu0 0.0
        %1933 = vmatpush1.msra.mxu0 %v1676
        %1934 = vmatprep.subr.mxu0 0.0
        %1935 = vmatpush1.msra.mxu0 0.0
        %1936 = vmatprep.subr.mxu0 0.0
        %1937 = vmatpush1.msra.mxu0 0.0
        %1938 = vmatprep.subr.mxu0 0.0
        %1939 = vmatpush1.msra.mxu0 0.0
        %1940 = vmatprep.subr.mxu0 0.0
        %1941 = vmatpush1.msra.mxu0 0.0
        %1942 = vmatprep.subr.mxu0 0.0
        %1943 = vmatpush1.msra.mxu0 0.0
        %1944 = vmatprep.subr.mxu0 0.0
        %1945 = vmatpush1.msra.mxu0 0.0
        %1946 = vmatprep.subr.mxu0 0.0
        %1947 = vmatpush1.msra.mxu0 0.0
        %1948 = vmatprep.subr.mxu0 0.0
        %1949 = vmatpush1.msra.mxu0 0.0
        %1950 = vmatprep.subr.mxu0 0.0
        %1951 = vmatpush1.msra.mxu0 0.0
        %1952 = vmatprep.subr.mxu0 0.0
        %1953 = vmatpush1.msra.mxu0 0.0
        %1954 = vmatprep.subr.mxu0 0.0
        %1955 = vmatpush1.msra.mxu0 0.0
        %1956 = vmatprep.subr.mxu0 0.0
        %1957 = vmatpush1.msra.mxu0 0.0
        %1958 = vmatprep.subr.mxu0 0.0
        %1959 = vmatpush1.msra.mxu0 0.0
        %1960 = vmatprep.subr.mxu0 0.0
        %1961 = vmatpush1.msra.mxu0 0.0
        %1962 = vmatprep.subr.mxu0 0.0
        %1963 = vmatpush1.msra.mxu0 0.0
        %1964 = vmatprep.subr.mxu0 0.0
        %1965 = vmatpush1.msra.mxu0 0.0
        %1966 = vmatprep.subr.mxu0 0.0
        %1967 = vmatpush1.msra.mxu0 0.0
        %1968 = vmatprep.subr.mxu0 0.0
        %1969 = vmatpush1.msra.mxu0 0.0
        %1970 = vmatprep.subr.mxu0 0.0
        %1971 = vmatpush1.msra.mxu0 0.0
        %1972 = vmatprep.subr.mxu0 0.0
        %1973 = vmatpush1.msra.mxu0 0.0
        %1974 = vmatprep.subr.mxu0 0.0
        %1975 = vmatpush1.msra.mxu0 0.0
        %1976 = vmatprep.subr.mxu0 0.0
        %1977 = vmatpush1.msra.mxu0 0.0
        %1978 = vmatprep.subr.mxu0 0.0
        %1979 = vmatpush1.msra.mxu0 0.0
        %1980 = vmatprep.subr.mxu0 0.0
        %1981 = vmatpush1.msra.mxu0 0.0
        %1982 = vmatprep.subr.mxu0 0.0
        %1983 = vmatpush1.msra.mxu0 0.0
        %1984 = vmatprep.subr.mxu0 0.0
        %1985 = vmatpush1.msra.mxu0 0.0
        %1986 = vmatprep.subr.mxu0 0.0
        %1987 = vmatpush1.msra.mxu0 0.0
        %1988 = vmatprep.subr.mxu0 0.0
        %1989 = vmatpush1.msra.mxu0 0.0
        %1990 = vmatprep.mubr.f32.mxu0 0.0
        %1991 = vmatmul.mubr.f32.gmra.mrb[0].mxu0 %v1921
        %v1992 = vpop.f32.mrb[0].mxu0
        %v1993 = vadd.f32 0.0, %v1992
        %v1994 = vpop.f32.mrb[0].mxu0
        %1995 = vmatprep.mubr.f32.mxu0 0.0
        %1996 = vmatmul.mubr.f32.gmra.mrb[0].mxu0 %v1924
        %v1997 = vpop.f32.mrb[0].mxu0
        %v1998 = vadd.f32 0.0, %v1997
        %v1999 = vpop.f32.mrb[0].mxu0
        %2000 = vdwg.mxu0
        %v2001 = vadd.f32 %v1750, %v1831
        %v2002 = vadd.f32 %v2001, %v1912
        %v2003 = vadd.f32 %v2002, %v1993
        %v2004 = vadd.f32 %v1755, %v1836
        %v2005 = vadd.f32 %v2004, %v1917
        %v2006 = vadd.f32 %v2005, %v1998
        %v2007 = vld [vmem:[#allocation11] sm:$0x1]
        %v2009 = vlaneseq
        %v2010 = vshrl.u32 %v2009, 7
        %v2011 = vsub.s32 0, %v2010
        %v2012 = vrot.slane %v2007, %v2011
        %v2014 = vadd.f32 %v2003, %v2012
        %v2015 = vadd.f32 %v2006, %v2012
        %v2016 = vadd.f32 %v578, %v2014
        %v2017 = vadd.f32 %v579, %v2015
        %2018 = vadd.xlane.f32.xlu0 %v2016
        %v2019 = vpop.xlane.xlu0 %2018
        %2020 = vadd.xlane.f32.xlu0 %v2017
        %v2021 = vpop.xlane.xlu0 %2020
        %v2022 = vrcp.pop 128.0
        %v2023 = vmul.f32 %v2019, %v2022
        %v2024 = vmul.f32 %v2021, %v2022
        %v2025 = vsub.f32 %v2016, %v2023
        %v2026 = vsub.f32 %v2017, %v2024
        %v2027 = vmul.f32 %v2025, %v2025
        %v2028 = vmul.f32 %v2026, %v2026
        %2029 = vadd.xlane.f32.xlu0 %v2027
        %v2030 = vpop.xlane.xlu0 %2029
        %2031 = vadd.xlane.f32.xlu0 %v2028
        %v2032 = vpop.xlane.xlu0 %2031
        %v2033 = vmul.f32 %v2030, %v2022
        %v2034 = vmul.f32 %v2032, %v2022
        %v2035 = vadd.f32 %v2033, 1e-05
        %v2036 = vadd.f32 %v2034, 1e-05
        %v2037 = vrsqrt.pop %v2035
        %v2038 = vrsqrt.pop %v2036
        %v2039 = vmul.f32 %v2025, %v2037
        %v2040 = vmul.f32 %v2026, %v2038
        %v2041 = vld [vmem:[#allocation19] sm:$0x1]
        %v2043 = vlaneseq
        %v2044 = vshrl.u32 %v2043, 7
        %v2045 = vsub.s32 0, %v2044
        %v2046 = vrot.slane %v2041, %v2045
        %v2048 = vmul.f32 %v2039, %v2046
        %v2049 = vmul.f32 %v2040, %v2046
        %v2050 = vld [vmem:[#allocation20] sm:$0x1]
        %v2052 = vlaneseq
        %v2053 = vshrl.u32 %v2052, 7
        %v2054 = vsub.s32 0, %v2053
        %v2055 = vrot.slane %v2050, %v2054
        %v2057 = vadd.f32 %v2048, %v2055
        %v2058 = vadd.f32 %v2049, %v2055
        %v2059 = vld [vmem:[#allocation13] sm:$0xff]
        %v2060 = vld [vmem:[#allocation13 + $0x8] sm:$0xff]
        %v2061 = vld [vmem:[#allocation13 + $0x10] sm:$0xff]
        %v2062 = vld [vmem:[#allocation13 + $0x18] sm:$0xff]
        %v2063 = vld [vmem:[#allocation13 + $0x20] sm:$0xff]
        %v2064 = vld [vmem:[#allocation13 + $0x28] sm:$0xff]
        %v2065 = vld [vmem:[#allocation13 + $0x30] sm:$0xff]
        %v2066 = vld [vmem:[#allocation13 + $0x38] sm:$0xff]
        %v2067 = vld [vmem:[#allocation13 + $0x40] sm:$0xff]
        %v2068 = vld [vmem:[#allocation13 + $0x48] sm:$0xff]
        %v2069 = vld [vmem:[#allocation13 + $0x50] sm:$0xff]
        %v2070 = vld [vmem:[#allocation13 + $0x58] sm:$0xff]
        %v2071 = vld [vmem:[#allocation13 + $0x60] sm:$0xff]
        %v2072 = vld [vmem:[#allocation13 + $0x68] sm:$0xff]
        %v2073 = vld [vmem:[#allocation13 + $0x70] sm:$0xff]
        %v2074 = vld [vmem:[#allocation13 + $0x78] sm:$0xff]
        %v2075 = vld [vmem:[#allocation13 + $0x80] sm:$0xff]
        %v2076 = vld [vmem:[#allocation13 + $0x88] sm:$0xff]
        %v2077 = vld [vmem:[#allocation13 + $0x90] sm:$0xff]
        %v2078 = vld [vmem:[#allocation13 + $0x98] sm:$0xff]
        %v2079 = vld [vmem:[#allocation13 + $0xa0] sm:$0xff]
        %v2080 = vld [vmem:[#allocation13 + $0xa8] sm:$0xff]
        %v2081 = vld [vmem:[#allocation13 + $0xb0] sm:$0xff]
        %v2082 = vld [vmem:[#allocation13 + $0xb8] sm:$0xff]
        %v2083 = vld [vmem:[#allocation13 + $0xc0] sm:$0xff]
        %v2084 = vld [vmem:[#allocation13 + $0xc8] sm:$0xff]
        %v2085 = vld [vmem:[#allocation13 + $0xd0] sm:$0xff]
        %v2086 = vld [vmem:[#allocation13 + $0xd8] sm:$0xff]
        %v2087 = vld [vmem:[#allocation13 + $0xe0] sm:$0xff]
        %v2088 = vld [vmem:[#allocation13 + $0xe8] sm:$0xff]
        %v2089 = vld [vmem:[#allocation13 + $0xf0] sm:$0xff]
        %v2090 = vld [vmem:[#allocation13 + $0xf8] sm:$0xff]
        %v2091 = vld [vmem:[#allocation14] sm:$0x3]
        %v2093 = vlaneseq
        %v2094 = vshrl.u32 %v2093, 7
        %v2095 = vsub.s32 0, %v2094
        %v2096 = vrot.slane %v2091, %v2095
        %v2097 = vlaneseq
        %v2098 = vshrl.u32 %v2097, 7
        %v2099 = vsub.s32 1, %v2098
        %v2100 = vrot.slane %v2091, %v2099
        %2103 = vmatprep.subr.mxu0 %v2060
        %2104 = vmatpush1.msra.mxu0 %v2059
        %2105 = vmatprep.subr.mxu0 %v2062
        %2106 = vmatpush1.msra.mxu0 %v2061
        %2107 = vmatprep.subr.mxu0 %v2064
        %2108 = vmatpush1.msra.mxu0 %v2063
        %2109 = vmatprep.subr.mxu0 %v2066
        %2110 = vmatpush1.msra.mxu0 %v2065
        %2111 = vmatprep.subr.mxu0 %v2068
        %2112 = vmatpush1.msra.mxu0 %v2067
        %2113 = vmatprep.subr.mxu0 %v2070
        %2114 = vmatpush1.msra.mxu0 %v2069
        %2115 = vmatprep.subr.mxu0 %v2072
        %2116 = vmatpush1.msra.mxu0 %v2071
        %2117 = vmatprep.subr.mxu0 %v2074
        %2118 = vmatpush1.msra.mxu0 %v2073
        %2119 = vmatprep.subr.mxu0 %v2076
        %2120 = vmatpush1.msra.mxu0 %v2075
        %2121 = vmatprep.subr.mxu0 %v2078
        %2122 = vmatpush1.msra.mxu0 %v2077
        %2123 = vmatprep.subr.mxu0 %v2080
        %2124 = vmatpush1.msra.mxu0 %v2079
        %2125 = vmatprep.subr.mxu0 %v2082
        %2126 = vmatpush1.msra.mxu0 %v2081
        %2127 = vmatprep.subr.mxu0 %v2084
        %2128 = vmatpush1.msra.mxu0 %v2083
        %2129 = vmatprep.subr.mxu0 %v2086
        %2130 = vmatpush1.msra.mxu0 %v2085
        %2131 = vmatprep.subr.mxu0 %v2088
        %2132 = vmatpush1.msra.mxu0 %v2087
        %2133 = vmatprep.subr.mxu0 %v2090
        %2134 = vmatpush1.msra.mxu0 %v2089
        %2135 = vmatprep.subr.mxu0 0.0
        %2136 = vmatpush1.msra.mxu0 0.0
        %2137 = vmatprep.subr.mxu0 0.0
        %2138 = vmatpush1.msra.mxu0 0.0
        %2139 = vmatprep.subr.mxu0 0.0
        %2140 = vmatpush1.msra.mxu0 0.0
        %2141 = vmatprep.subr.mxu0 0.0
        %2142 = vmatpush1.msra.mxu0 0.0
        %2143 = vmatprep.subr.mxu0 0.0
        %2144 = vmatpush1.msra.mxu0 0.0
        %2145 = vmatprep.subr.mxu0 0.0
        %2146 = vmatpush1.msra.mxu0 0.0
        %2147 = vmatprep.subr.mxu0 0.0
        %2148 = vmatpush1.msra.mxu0 0.0
        %2149 = vmatprep.subr.mxu0 0.0
        %2150 = vmatpush1.msra.mxu0 0.0
        %2151 = vmatprep.subr.mxu0 0.0
        %2152 = vmatpush1.msra.mxu0 0.0
        %2153 = vmatprep.subr.mxu0 0.0
        %2154 = vmatpush1.msra.mxu0 0.0
        %2155 = vmatprep.subr.mxu0 0.0
        %2156 = vmatpush1.msra.mxu0 0.0
        %2157 = vmatprep.subr.mxu0 0.0
        %2158 = vmatpush1.msra.mxu0 0.0
        %2159 = vmatprep.subr.mxu0 0.0
        %2160 = vmatpush1.msra.mxu0 0.0
        %2161 = vmatprep.subr.mxu0 0.0
        %2162 = vmatpush1.msra.mxu0 0.0
        %2163 = vmatprep.subr.mxu0 0.0
        %2164 = vmatpush1.msra.mxu0 0.0
        %2165 = vmatprep.subr.mxu0 0.0
        %2166 = vmatpush1.msra.mxu0 0.0
        %2167 = vmatprep.mubr.f32.mxu0 0.0
        %2168 = vmatmul.mubr.f32.gmra.mrb[0].mxu0 %v2057
        %v2169 = vpop.f32.mrb[0].mxu0
        %v2170 = vadd.f32 %v2096, %v2169
        %v2171 = vpop.f32.mrb[0].mxu0
        %v2172 = vadd.f32 %v2100, %v2171
        %2173 = vmatprep.mubr.f32.mxu0 0.0
        %2174 = vmatmul.mubr.f32.gmra.mrb[0].mxu0 %v2058
        %v2175 = vpop.f32.mrb[0].mxu0
        %v2176 = vadd.f32 %v2096, %v2175
        %v2177 = vpop.f32.mrb[0].mxu0
        %v2178 = vadd.f32 %v2100, %v2177
        %2179 = vdwg.mxu0
        %v2180 = vmax.f32 %v2170, 0.0
        %v2181 = vmax.f32 %v2172, 0.0
        %v2182 = vmax.f32 %v2176, 0.0
        %v2183 = vmax.f32 %v2178, 0.0
        %v2184 = vld [vmem:[#allocation16] sm:$0xff]
        %v2185 = vld [vmem:[#allocation16 + $0x8] sm:$0xff]
        %v2186 = vld [vmem:[#allocation16 + $0x10] sm:$0xff]
        %v2187 = vld [vmem:[#allocation16 + $0x18] sm:$0xff]
        %v2188 = vld [vmem:[#allocation16 + $0x20] sm:$0xff]
        %v2189 = vld [vmem:[#allocation16 + $0x28] sm:$0xff]
        %v2190 = vld [vmem:[#allocation16 + $0x30] sm:$0xff]
        %v2191 = vld [vmem:[#allocation16 + $0x38] sm:$0xff]
        %v2192 = vld [vmem:[#allocation16 + $0x40] sm:$0xff]
        %v2193 = vld [vmem:[#allocation16 + $0x48] sm:$0xff]
        %v2194 = vld [vmem:[#allocation16 + $0x50] sm:$0xff]
        %v2195 = vld [vmem:[#allocation16 + $0x58] sm:$0xff]
        %v2196 = vld [vmem:[#allocation16 + $0x60] sm:$0xff]
        %v2197 = vld [vmem:[#allocation16 + $0x68] sm:$0xff]
        %v2198 = vld [vmem:[#allocation16 + $0x70] sm:$0xff]
        %v2199 = vld [vmem:[#allocation16 + $0x78] sm:$0xff]
        %v2200 = vld [vmem:[#allocation16 + $0x80] sm:$0xff]
        %v2201 = vld [vmem:[#allocation16 + $0x88] sm:$0xff]
        %v2202 = vld [vmem:[#allocation16 + $0x90] sm:$0xff]
        %v2203 = vld [vmem:[#allocation16 + $0x98] sm:$0xff]
        %v2204 = vld [vmem:[#allocation16 + $0xa0] sm:$0xff]
        %v2205 = vld [vmem:[#allocation16 + $0xa8] sm:$0xff]
        %v2206 = vld [vmem:[#allocation16 + $0xb0] sm:$0xff]
        %v2207 = vld [vmem:[#allocation16 + $0xb8] sm:$0xff]
        %v2208 = vld [vmem:[#allocation16 + $0xc0] sm:$0xff]
        %v2209 = vld [vmem:[#allocation16 + $0xc8] sm:$0xff]
        %v2210 = vld [vmem:[#allocation16 + $0xd0] sm:$0xff]
        %v2211 = vld [vmem:[#allocation16 + $0xd8] sm:$0xff]
        %v2212 = vld [vmem:[#allocation16 + $0xe0] sm:$0xff]
        %v2213 = vld [vmem:[#allocation16 + $0xe8] sm:$0xff]
        %v2214 = vld [vmem:[#allocation16 + $0xf0] sm:$0xff]
        %v2215 = vld [vmem:[#allocation16 + $0xf8] sm:$0xff]
        %v2216 = vld [vmem:[#allocation17] sm:$0x1]
        %v2218 = vlaneseq
        %v2219 = vshrl.u32 %v2218, 7
        %v2220 = vsub.s32 0, %v2219
        %v2221 = vrot.slane %v2216, %v2220
        %2223 = vmatprep.subr.mxu0 0.0
        %2224 = vmatpush1.msra.mxu0 %v2184
        %2225 = vmatprep.subr.mxu0 0.0
        %2226 = vmatpush1.msra.mxu0 %v2185
        %2227 = vmatprep.subr.mxu0 0.0
        %2228 = vmatpush1.msra.mxu0 %v2186
        %2229 = vmatprep.subr.mxu0 0.0
        %2230 = vmatpush1.msra.mxu0 %v2187
        %2231 = vmatprep.subr.mxu0 0.0
        %2232 = vmatpush1.msra.mxu0 %v2188
        %2233 = vmatprep.subr.mxu0 0.0
        %2234 = vmatpush1.msra.mxu0 %v2189
        %2235 = vmatprep.subr.mxu0 0.0
        %2236 = vmatpush1.msra.mxu0 %v2190
        %2237 = vmatprep.subr.mxu0 0.0
        %2238 = vmatpush1.msra.mxu0 %v2191
        %2239 = vmatprep.subr.mxu0 0.0
        %2240 = vmatpush1.msra.mxu0 %v2192
        %2241 = vmatprep.subr.mxu0 0.0
        %2242 = vmatpush1.msra.mxu0 %v2193
        %2243 = vmatprep.subr.mxu0 0.0
        %2244 = vmatpush1.msra.mxu0 %v2194
        %2245 = vmatprep.subr.mxu0 0.0
        %2246 = vmatpush1.msra.mxu0 %v2195
        %2247 = vmatprep.subr.mxu0 0.0
        %2248 = vmatpush1.msra.mxu0 %v2196
        %2249 = vmatprep.subr.mxu0 0.0
        %2250 = vmatpush1.msra.mxu0 %v2197
        %2251 = vmatprep.subr.mxu0 0.0
        %2252 = vmatpush1.msra.mxu0 %v2198
        %2253 = vmatprep.subr.mxu0 0.0
        %2254 = vmatpush1.msra.mxu0 %v2199
        %2255 = vmatprep.subr.mxu0 0.0
        %2256 = vmatpush1.msra.mxu0 %v2200
        %2257 = vmatprep.subr.mxu0 0.0
        %2258 = vmatpush1.msra.mxu0 %v2201
        %2259 = vmatprep.subr.mxu0 0.0
        %2260 = vmatpush1.msra.mxu0 %v2202
        %2261 = vmatprep.subr.mxu0 0.0
        %2262 = vmatpush1.msra.mxu0 %v2203
        %2263 = vmatprep.subr.mxu0 0.0
        %2264 = vmatpush1.msra.mxu0 %v2204
        %2265 = vmatprep.subr.mxu0 0.0
        %2266 = vmatpush1.msra.mxu0 %v2205
        %2267 = vmatprep.subr.mxu0 0.0
        %2268 = vmatpush1.msra.mxu0 %v2206
        %2269 = vmatprep.subr.mxu0 0.0
        %2270 = vmatpush1.msra.mxu0 %v2207
        %2271 = vmatprep.subr.mxu0 0.0
        %2272 = vmatpush1.msra.mxu0 %v2208
        %2273 = vmatprep.subr.mxu0 0.0
        %2274 = vmatpush1.msra.mxu0 %v2209
        %2275 = vmatprep.subr.mxu0 0.0
        %2276 = vmatpush1.msra.mxu0 %v2210
        %2277 = vmatprep.subr.mxu0 0.0
        %2278 = vmatpush1.msra.mxu0 %v2211
        %2279 = vmatprep.subr.mxu0 0.0
        %2280 = vmatpush1.msra.mxu0 %v2212
        %2281 = vmatprep.subr.mxu0 0.0
        %2282 = vmatpush1.msra.mxu0 %v2213
        %2283 = vmatprep.subr.mxu0 0.0
        %2284 = vmatpush1.msra.mxu0 %v2214
        %2285 = vmatprep.subr.mxu0 0.0
        %2286 = vmatpush1.msra.mxu0 %v2215
        %2287 = vmatprep.mubr.f32.mxu0 %v2181
        %2288 = vmatmul.mubr.f32.gmra.mrb[0].mxu0 %v2180
        %v2289 = vpop.f32.mrb[0].mxu0
        %v2290 = vadd.f32 %v2221, %v2289
        %v2291 = vpop.f32.mrb[0].mxu0
        %2292 = vmatprep.mubr.f32.mxu0 %v2183
        %2293 = vmatmul.mubr.f32.gmra.mrb[0].mxu0 %v2182
        %v2294 = vpop.f32.mrb[0].mxu0
        %v2295 = vadd.f32 %v2221, %v2294
        %v2296 = vpop.f32.mrb[0].mxu0
        %2297 = vdwg.mxu0
        %v2298 = vadd.f32 %v2057, %v2290
        %v2299 = vadd.f32 %v2058, %v2295
        %2300 = vadd.xlane.f32.xlu0 %v2298
        %v2301 = vpop.xlane.xlu0 %2300
        %2302 = vadd.xlane.f32.xlu0 %v2299
        %v2303 = vpop.xlane.xlu0 %2302
        %v2304 = vmul.f32 %v2301, %v2022
        %v2305 = vmul.f32 %v2303, %v2022
        %v2306 = vsub.f32 %v2298, %v2304
        %v2307 = vsub.f32 %v2299, %v2305
        %v2308 = vmul.f32 %v2306, %v2306
        %v2309 = vmul.f32 %v2307, %v2307
        %2310 = vadd.xlane.f32.xlu0 %v2308
        %v2311 = vpop.xlane.xlu0 %2310
        %2312 = vadd.xlane.f32.xlu0 %v2309
        %v2313 = vpop.xlane.xlu0 %2312
        %v2314 = vmul.f32 %v2311, %v2022
        %v2315 = vmul.f32 %v2313, %v2022
        %v2316 = vadd.f32 %v2314, 1e-05
        %v2317 = vadd.f32 %v2315, 1e-05
        %v2318 = vrsqrt.pop %v2316
        %v2319 = vrsqrt.pop %v2317
        %v2320 = vmul.f32 %v2306, %v2318
        %v2321 = vmul.f32 %v2307, %v2319
        %v2322 = vld [vmem:[#allocation22] sm:$0x1]
        %v2324 = vlaneseq
        %v2325 = vshrl.u32 %v2324, 7
        %v2326 = vsub.s32 0, %v2325
        %v2327 = vrot.slane %v2322, %v2326
        %v2329 = vmul.f32 %v2320, %v2327
        %v2330 = vmul.f32 %v2321, %v2327
        %v2331 = vld [vmem:[#allocation23] sm:$0x1]
        %v2333 = vlaneseq
        %v2334 = vshrl.u32 %v2333, 7
        %v2335 = vsub.s32 0, %v2334
        %v2336 = vrot.slane %v2331, %v2335
        %v2338 = vadd.f32 %v2329, %v2336
        %v2339 = vadd.f32 %v2330, %v2336
        %2340 = vst [vmem:[%s577] sm:$0xff] %v2338
        %2341 = vst [vmem:[%s577 + $0x8] sm:$0xff] %v2339
        %s2342 = sand.u32 %s300, 1
        %s2343 = scalar_lea.sflag [#allocation7], %s2342
        %s2344 = sand.u32 %s300, 1
        %s2345 = smul.addr %s2344, 16
        %s2346 = scalar_lea.vmem [#allocation25], %s2345
        // Predicated region
        $region117: #{tpu_custom_call.1} parent=67 // pred_check
          %p2347 = pneg %p310
        $region118: #{tpu_custom_call.1} parent=67 // pred_check_branch
          %2349 = sbr.rel (%p2347) target = $region120
        $region119: #{tpu_custom_call.1} parent=67 // pred_region
          %s2351 = ssub.s32 256, 256
          %2352 = vsyncadd %s2343, %s2351
          %s2353 = smul.addr %s35, 2
          %s2354 = smul.addr %s2353, 128
          %s2355 = scalar_lea.hbm %s12, %s2354
          %s2356 = sshll.u32 %s2346, 4
          %s2357 = int_to_ptr.vmem [resolvable:$true] %s2356
          %2362 = dma.vmem_to_hbm [thread:$0]  %s2357, 256, %s2355, %s2343, 128, 128, 8
        $region120: #{tpu_custom_call.1} parent=67 // pred_fallthru
          _
      $region68: #{tpu_custom_call.1} parent=5 // pred_fallthru
        _
      %p2363 = scmp.le.s32.totalorder 2, %s30
      // Predicated region
      $region121: #{tpu_custom_call.1} parent=5 // pred_check
        %p2364 = pneg %p2363
      $region122: #{tpu_custom_call.1} parent=5 // pred_check_branch
        %2366 = sbr.rel (%p2364) target = $region124
      $region123: #{tpu_custom_call.1} parent=5 // pred_region
        %s2367 = ssub.s32 %s30, 2
        // Predicated region
        $region125: #{tpu_custom_call.1} parent=123 // pred_check
          %p2368 = pneg %p316
        $region126: #{tpu_custom_call.1} parent=123 // pred_check_branch
          %2370 = sbr.rel (%p2368) target = $region128
        $region127: #{tpu_custom_call.1} parent=123 // pred_region
          %s2371 = sand.u32 %s301, 1
          %s2372 = scalar_lea.sflag [#allocation7], %s2371
          %s2373 = sand.u32 %s301, 1
          %s2374 = smul.addr %s2373, 16
          %s2375 = scalar_lea.vmem [#allocation25], %s2374
          %2376 = dma.done %s2372, 256
        $region128: #{tpu_custom_call.1} parent=123 // pred_fallthru
          _
      $region124: #{tpu_custom_call.1} parent=5 // pred_fallthru
        _
    $region6: #{tpu_custom_call.1} parent=1 // loop_footer
      %s34 = sadd.s32 1, %s30
    $region7: #{tpu_custom_call.1} parent=1 // loop_footer_branch
      %29 = sbr.rel target = $region3
    $region8: #{tpu_custom_call.1} parent=1 // loop_exit
      _
    %2377 = vsyncpa [#allocation6], 1
    %s2378 = scalar_lea.sflag [#allocation6], 1
    %2379 = vsyncpa %s2378, 1
    %2380 = vsyncpa [#allocation9], 1
    %2381 = vsyncpa [#allocation12], 1
    %2382 = vsyncpa [#allocation15], 1
    %2383 = vsyncpa [#allocation18], 1
    %2384 = vsyncpa [#allocation21], 1
    %2385 = vsyncpa [#allocation24], 1
    %2386 = vsyncpa [#allocation7], 1
    %s2387 = scalar_lea.sflag [#allocation7], 1
    %2388 = vsyncpa %s2387, 1

</llo_original>
